<compile_context>
chip_gen: v7x
topology: tpu7x:2x2x1
jax: 0.10.0
libtpu: 0.0.40
codegen_flags: <defaults>
</compile_context>

<pallas_src>
import jax
import jax.numpy as jnp
from jax.experimental import pallas as pl
from jax.experimental.pallas import tpu as pltpu


def _round_up(v, mult):
    return ((v + mult - 1) // mult) * mult


def _erf_f32(x):
    # Abramowitz & Stegun 7.1.26 polynomial erf (|err| < 1.5e-7): exp + VPU math only,
    # guaranteed to lower in Mosaic (erf_p support is spotty).
    a1, a2, a3, a4, a5 = 0.254829592, -0.284496736, 1.421413741, -1.453152027, 1.061405429
    p = 0.3275911
    sgn = jnp.where(x >= 0.0, 1.0, -1.0)
    ax = jnp.abs(x)
    t = 1.0 / (1.0 + p * ax)
    poly = ((((a5 * t + a4) * t + a3) * t + a2) * t + a1) * t
    return sgn * (1.0 - poly * jnp.exp(-ax * ax))


def _gelu_exact_f32(x):
    # Exact (erf-based) GELU, matching PyTorch nn.GELU() default.
    return 0.5 * x * (1.0 + _erf_f32(x * 0.7071067811865476))


def _mlp_resident_kernel(x_ref, w1_ref, b1_ref, w2_ref, b2_ref, o_ref):
    # One M tile, weights VMEM-resident: out = fc2(gelu(fc1(x))).
    # Operands are compute_dtype (bf16 by default); accumulation / bias / GELU are f32.
    h = jnp.dot(x_ref[...], w1_ref[...], preferred_element_type=jnp.float32) + b1_ref[...]
    h = _gelu_exact_f32(h)
    # TODO(synk): nn.Dropout is identity for the module default p=0.0 (and in eval);
    # training-mode stochastic dropout is not implemented here.
    o = jnp.dot(h.astype(w2_ref.dtype), w2_ref[...],
                preferred_element_type=jnp.float32) + b2_ref[...]
    o_ref[...] = o.astype(o_ref.dtype)


def _mlp_stream_kernel(x_ref, w1_ref, b1_ref, w2_ref, b2_ref, o_ref, acc_ref):
    # Grid = (M tiles, d_h chunks). Per chunk: fc1-chunk -> GELU -> partial fc2
    # accumulate into a (tm, d_out) f32 VMEM scratch; finalize at the last chunk.
    j = pl.program_id(1)

    @pl.when(j == 0)
    def _():
        acc_ref[...] = jnp.zeros_like(acc_ref)

    h = jnp.dot(x_ref[...], w1_ref[...], preferred_element_type=jnp.float32) + b1_ref[...]
    h = _gelu_exact_f32(h)
    acc_ref[...] += jnp.dot(h.astype(w2_ref.dtype), w2_ref[...],
                            preferred_element_type=jnp.float32)

    @pl.when(j == pl.num_programs(1) - 1)
    def _():
        o_ref[...] = (acc_ref[...] + b2_ref[...]).astype(o_ref.dtype)


def _resident_spec(shape):
    # Block index never changes across the grid -> single-buffer it to save VMEM.
    index_map = lambda *_: (0,) * len(shape)
    try:
        return pl.BlockSpec(shape, index_map, pipeline_mode=pl.Buffered(1))
    except TypeError:  # older jax without pipeline_mode on BlockSpec
        return pl.BlockSpec(shape, index_map)


def mlp_forward(x, w1, b1, w2, b2, *, tile_m=512, dh_chunk=2048,
                compute_dtype=jnp.bfloat16, force_stream=False):
    """x: (..., D_in). w1: (D_in, D_h), b1: (D_h,), w2: (D_h, D_out), b2: (D_out,).

    Weights are the (in, out) transposes of PyTorch's nn.Linear.weight (out, in).
    Matmul operands run in `compute_dtype` (bf16 = MXU-native); accumulation, bias add
    and GELU run in f32. Output keeps x.dtype.
    """
    lead = x.shape[:-1]
    d_in = x.shape[-1]
    d_h = w1.shape[1]
    d_out = w2.shape[1]
    out_dtype = x.dtype
    cdt = jnp.dtype(compute_dtype)

    m = 1
    for s in lead:
        m *= s

    # --- scoped VMEM budget per generation (v5e/v6e: 128 MiB, v7x: 64 MiB physical) ---
    try:
        vmem_phys = int(pltpu.get_tpu_info().vmem_capacity_bytes)
    except Exception:
        vmem_phys = 64 * 1024 * 1024
    vmem_limit = min(100 * 1024 * 1024, (vmem_phys * 3) // 4)

    # --- M tiling: 16-aligned for packed bf16 sublanes; guarantee >= 2 even grid
    # steps so the "parallel" axis shards across v7x megacore and pipelining engages.
    align = 16 if cdt.itemsize < 4 else 8
    n_steps = max(2, -(-m // tile_m))
    if n_steps % 2:
        n_steps += 1
    tm = max(align, min(tile_m, _round_up(-(-m // n_steps), align)))
    n_steps = max(2, -(-m // tm))
    if n_steps % 2:
        n_steps += 1
    m_pad = n_steps * tm

    x2d = x.reshape(m, d_in)
    if m_pad != m:
        x2d = jnp.pad(x2d, ((0, m_pad - m), (0, 0)))
    x2d = x2d.astype(cdt)            # cast once in the wrapper; halves x DMA bytes
    w1c = w1.astype(cdt)
    w2c = w2.astype(cdt)
    b1_2d = b1.reshape(1, d_h).astype(jnp.float32)
    b2_2d = b2.reshape(1, d_out).astype(jnp.float32)

    obytes = jnp.dtype(out_dtype).itemsize
    # VMEM footprint of the fully-resident path: weights single-buffered, x/out
    # double-buffered, plus the live f32 hidden tile.
    resident_bytes = (
        (d_in * d_h + d_h * d_out) * cdt.itemsize
        + (d_h + d_out) * 4
        + 2 * tm * d_in * cdt.itemsize
        + 2 * tm * d_out * obytes
        + tm * d_h * 4
    )
    use_stream = force_stream or resident_bytes > int(0.7 * vmem_limit)

    flops = 2 * m_pad * (d_in * d_h + d_h * d_out)
    transcendentals = m_pad * d_h    # one exp per hidden element (GELU)

    if not use_stream:
        cost = pl.CostEstimate(
            flops=flops, transcendentals=transcendentals,
            bytes_accessed=(x2d.size + w1c.size + w2c.size) * cdt.itemsize
            + m_pad * d_out * obytes + (b1_2d.size + b2_2d.size) * 4)
        out2d = pl.pallas_call(
            _mlp_resident_kernel,
            out_shape=jax.ShapeDtypeStruct((m_pad, d_out), out_dtype),
            grid=(m_pad // tm,),
            in_specs=[
                pl.BlockSpec((tm, d_in), lambda i: (i, 0)),   # streamed per M tile
                _resident_spec((d_in, d_h)),                  # VMEM-resident, 1 buffer
                _resident_spec((1, d_h)),
                _resident_spec((d_h, d_out)),
                _resident_spec((1, d_out)),
            ],
            out_specs=pl.BlockSpec((tm, d_out), lambda i: (i, 0)),
            compiler_params=pltpu.CompilerParams(
                dimension_semantics=("parallel",),
                vmem_limit_bytes=vmem_limit),
            cost_estimate=cost,
        )(x2d, w1c, b1_2d, w2c, b2_2d)
    else:
        # d_h-streaming path: hidden dim chunked on a trailing "arbitrary" grid axis;
        # the fc2 reduction lives in an f32 VMEM accumulator (P3 init/finalize).
        tdh = max(128, min(dh_chunk, _round_up(d_h, 128)))
        tdh = _round_up(tdh, 256) if tdh >= 256 else _round_up(tdh, 128)
        d_h_pad = _round_up(d_h, tdh)
        if d_h_pad != d_h:
            # zero padding is exact: gelu(0)=0 and the padded w2 rows are zero.
            w1c = jnp.pad(w1c, ((0, 0), (0, d_h_pad - d_h)))
            b1_2d = jnp.pad(b1_2d, ((0, 0), (0, d_h_pad - d_h)))
            w2c = jnp.pad(w2c, ((0, d_h_pad - d_h), (0, 0)))
        n_dh = d_h_pad // tdh
        grid_m = m_pad // tm
        cost = pl.CostEstimate(
            flops=flops, transcendentals=transcendentals,
            bytes_accessed=x2d.size * cdt.itemsize
            + grid_m * (w1c.size + w2c.size) * cdt.itemsize
            + m_pad * d_out * obytes
            + (grid_m * b1_2d.size + b2_2d.size) * 4)
        out2d = pl.pallas_call(
            _mlp_stream_kernel,
            out_shape=jax.ShapeDtypeStruct((m_pad, d_out), out_dtype),
            grid=(grid_m, n_dh),
            in_specs=[
                pl.BlockSpec((tm, d_in), lambda i, j: (i, 0)),    # resident across j
                pl.BlockSpec((d_in, tdh), lambda i, j: (0, j)),   # streamed w1 columns
                pl.BlockSpec((1, tdh), lambda i, j: (0, j)),
                pl.BlockSpec((tdh, d_out), lambda i, j: (j, 0)),  # streamed w2 rows
                _resident_spec((1, d_out)),
            ],
            out_specs=pl.BlockSpec((tm, d_out), lambda i, j: (i, 0)),
            scratch_shapes=[pltpu.VMEM((tm, d_out), jnp.float32)],
            compiler_params=pltpu.CompilerParams(
                dimension_semantics=("parallel", "arbitrary"),
                vmem_limit_bytes=vmem_limit),
            cost_estimate=cost,
        )(x2d, w1c, b1_2d, w2c, b2_2d)

    if m_pad != m:
        out2d = out2d[:m]
    return out2d.reshape(lead + (d_out,))


if __name__ == "__main__":
    key = jax.random.PRNGKey(0)
    k_x, k_w1, k_b1, k_w2, k_b2 = jax.random.split(key, 5)

    B, S = 2, 8                   # small batch / sequence -> M = 16 tokens
    D_IN, D_H = 256, 512          # multiples of 256 -> full 256-wide MXU on v6e/v7x
    D_OUT = D_IN                  # Mlp default: out_features = in_features

    x = jax.random.normal(k_x, (B, S, D_IN), dtype=jnp.float32)
    # PyTorch nn.Linear.weight is (out, in); pass the (in, out) transpose to the kernel.
    w1 = (jax.random.normal(k_w1, (D_H, D_IN), dtype=jnp.float32) * 0.05).T
    b1 = jax.random.normal(k_b1, (D_H,), dtype=jnp.float32) * 0.05
    w2 = (jax.random.normal(k_w2, (D_OUT, D_H), dtype=jnp.float32) * 0.05).T
    b2 = jax.random.normal(k_b2, (D_OUT,), dtype=jnp.float32) * 0.05

    # Resident-weights path (default): bf16 MXU operands + f32 accumulation.
    out = mlp_forward(x, w1, b1, w2, b2)
    jax.block_until_ready(out)
    assert out.shape == (B, S, D_OUT)

    # d_h-streaming accumulator path (engages automatically at v7x-scale weights;
    # forced here so the small demo exercises it too: 2 hidden chunks of 256).
    out_stream = mlp_forward(x, w1, b1, w2, b2, force_stream=True, dh_chunk=256)
    jax.block_until_ready(out_stream)
    assert out_stream.shape == (B, S, D_OUT)

    def reference_mirror(x, w1, b1, w2, b2, cdt=jnp.bfloat16):
        # Mirrors the kernel's compute dtype (bf16 operands, f32 accumulation).
        h = jnp.dot(x.astype(cdt), w1.astype(cdt),
                    preferred_element_type=jnp.float32) + b1.astype(jnp.float32)
        h = jax.nn.gelu(h, approximate=False)
        o = jnp.dot(h.astype(cdt), w2.astype(cdt),
                    preferred_element_type=jnp.float32) + b2.astype(jnp.float32)
        return o.astype(x.dtype)

    def reference_f32(x, w1, b1, w2, b2):
        # Full-f32 PyTorch-semantics reference (exact erf GELU).
        h = jnp.dot(x.astype(jnp.float32), w1.astype(jnp.float32)) + b1.astype(jnp.float32)
        h = jax.nn.gelu(h, approximate=False)
        o = jnp.dot(h, w2.astype(jnp.float32)) + b2.astype(jnp.float32)
        return o.astype(x.dtype)

    ref_m = reference_mirror(x, w1, b1, w2, b2)
    ref_f = reference_f32(x, w1, b1, w2, b2)

    assert jnp.allclose(out, ref_m, atol=2e-3, rtol=2e-3), float(jnp.max(jnp.abs(out - ref_m)))
    assert jnp.allclose(out_stream, ref_m, atol=2e-3, rtol=2e-3), float(jnp.max(jnp.abs(out_stream - ref_m)))
    assert jnp.allclose(out, ref_f, atol=5e-2, rtol=5e-2), float(jnp.max(jnp.abs(out - ref_f)))

    print("KERNEL_OK")
</pallas_src>

<mosaic_0001>
module attributes {stable_mosaic.version = 11 : i64} {
  func.func @_mlp_resident_kernel(%arg0: i32, %arg1: memref<16x256xbf16, #tpu.memory_space<vmem>>, %arg2: memref<256x512xbf16, #tpu.memory_space<vmem>>, %arg3: memref<1x512xf32, #tpu.memory_space<vmem>>, %arg4: memref<512x256xbf16, #tpu.memory_space<vmem>>, %arg5: memref<1x256xf32, #tpu.memory_space<vmem>>, %arg6: memref<16x256xf32, #tpu.memory_space<vmem>>) attributes {dimension_semantics = [#tpu.dimension_semantics<parallel>], iteration_bounds = array<i64: 2>, scalar_prefetch = 0 : i64, scratch_operands = 0 : i64, tpu.core_type = #tpu.core_type<tc>, window_params = [{transform_indices = @transform_0, window_bounds = array<i64: 16, 256>}, {pipeline_mode = #tpu.pipeline_mode<synchronous>, transform_indices = @transform_1, window_bounds = array<i64: 256, 512>}, {pipeline_mode = #tpu.pipeline_mode<synchronous>, transform_indices = @transform_2, window_bounds = array<i64: 1, 512>}, {pipeline_mode = #tpu.pipeline_mode<synchronous>, transform_indices = @transform_3, window_bounds = array<i64: 512, 256>}, {pipeline_mode = #tpu.pipeline_mode<synchronous>, transform_indices = @transform_4, window_bounds = array<i64: 1, 256>}, {transform_indices = @transform_5, window_bounds = array<i64: 16, 256>}]} {
    %c0 = arith.constant 0 : index
    %c0_0 = arith.constant 0 : index
    %0 = vector.load %arg1[%c0, %c0_0] : memref<16x256xbf16, #tpu.memory_space<vmem>>, vector<16x256xbf16>
    %c0_1 = arith.constant 0 : index
    %c0_2 = arith.constant 0 : index
    %1 = vector.load %arg2[%c0_1, %c0_2] : memref<256x512xbf16, #tpu.memory_space<vmem>>, vector<256x512xbf16>
    %cst = arith.constant dense<0.000000e+00> : vector<16x512xf32>
    %2 = tpu.matmul %0, %1, %cst {dimension_numbers = #tpu.dot_dimension_numbers<[1], [0], [0], [1], [0, 0, 1, 1], [], []>} : vector<16x256xbf16>, vector<256x512xbf16>, vector<16x512xf32> -> vector<16x512xf32>
    %c0_3 = arith.constant 0 : index
    %c0_4 = arith.constant 0 : index
    %3 = vector.load %arg3[%c0_3, %c0_4] : memref<1x512xf32, #tpu.memory_space<vmem>>, vector<1x512xf32>
    %4 = vector.broadcast %3 : vector<1x512xf32> to vector<16x512xf32>
    %5 = arith.addf %2, %4 : vector<16x512xf32>
    %cst_5 = arith.constant 5.000000e-01 : f32
    %6 = vector.broadcast %cst_5 : f32 to vector<16x512xf32>
    %7 = arith.mulf %6, %5 : vector<16x512xf32>
    %cst_6 = arith.constant 0.707106769 : f32
    %8 = vector.broadcast %cst_6 : f32 to vector<16x512xf32>
    %9 = arith.mulf %5, %8 : vector<16x512xf32>
    %cst_7 = arith.constant 0.000000e+00 : f32
    %10 = vector.broadcast %cst_7 : f32 to vector<16x512xf32>
    %11 = arith.cmpf oge, %9, %10 : vector<16x512xf32>
    %cst_8 = arith.constant 1.000000e+00 : f32
    %cst_9 = arith.constant -1.000000e+00 : f32
    %12 = vector.broadcast %cst_8 : f32 to vector<16x512xf32>
    %13 = vector.broadcast %cst_9 : f32 to vector<16x512xf32>
    %14 = arith.select %11, %12, %13 : vector<16x512xi1>, vector<16x512xf32>
    %15 = math.absf %9 : vector<16x512xf32>
    %cst_10 = arith.constant 0.327591091 : f32
    %16 = vector.broadcast %cst_10 : f32 to vector<16x512xf32>
    %17 = arith.mulf %16, %15 : vector<16x512xf32>
    %cst_11 = arith.constant 1.000000e+00 : f32
    %18 = vector.broadcast %cst_11 : f32 to vector<16x512xf32>
    %19 = arith.addf %18, %17 : vector<16x512xf32>
    %cst_12 = arith.constant 1.000000e+00 : f32
    %20 = vector.broadcast %cst_12 : f32 to vector<16x512xf32>
    %21 = arith.divf %20, %19 : vector<16x512xf32>
    %cst_13 = arith.constant 1.06140542 : f32
    %22 = vector.broadcast %cst_13 : f32 to vector<16x512xf32>
    %23 = arith.mulf %22, %21 : vector<16x512xf32>
    %cst_14 = arith.constant -1.45315206 : f32
    %24 = vector.broadcast %cst_14 : f32 to vector<16x512xf32>
    %25 = arith.addf %23, %24 : vector<16x512xf32>
    %26 = arith.mulf %25, %21 : vector<16x512xf32>
    %cst_15 = arith.constant 1.42141378 : f32
    %27 = vector.broadcast %cst_15 : f32 to vector<16x512xf32>
    %28 = arith.addf %26, %27 : vector<16x512xf32>
    %29 = arith.mulf %28, %21 : vector<16x512xf32>
    %cst_16 = arith.constant -0.284496725 : f32
    %30 = vector.broadcast %cst_16 : f32 to vector<16x512xf32>
    %31 = arith.addf %29, %30 : vector<16x512xf32>
    %32 = arith.mulf %31, %21 : vector<16x512xf32>
    %cst_17 = arith.constant 0.254829586 : f32
    %33 = vector.broadcast %cst_17 : f32 to vector<16x512xf32>
    %34 = arith.addf %32, %33 : vector<16x512xf32>
    %35 = arith.mulf %34, %21 : vector<16x512xf32>
    %cst_18 = arith.constant 0.000000e+00 : f32
    %36 = vector.broadcast %cst_18 : f32 to vector<16x512xf32>
    %37 = arith.subf %36, %15 : vector<16x512xf32>
    %38 = arith.mulf %37, %15 : vector<16x512xf32>
    %39 = math.exp %38 : vector<16x512xf32>
    %40 = arith.mulf %35, %39 : vector<16x512xf32>
    %cst_19 = arith.constant 1.000000e+00 : f32
    %41 = vector.broadcast %cst_19 : f32 to vector<16x512xf32>
    %42 = arith.subf %41, %40 : vector<16x512xf32>
    %43 = arith.mulf %14, %42 : vector<16x512xf32>
    %cst_20 = arith.constant 1.000000e+00 : f32
    %44 = vector.broadcast %cst_20 : f32 to vector<16x512xf32>
    %45 = arith.addf %44, %43 : vector<16x512xf32>
    %46 = arith.mulf %7, %45 : vector<16x512xf32>
    %47 = arith.truncf %46 : vector<16x512xf32> to vector<16x512xbf16>
    %c0_21 = arith.constant 0 : index
    %c0_22 = arith.constant 0 : index
    %48 = vector.load %arg4[%c0_21, %c0_22] : memref<512x256xbf16, #tpu.memory_space<vmem>>, vector<512x256xbf16>
    %cst_23 = arith.constant dense<0.000000e+00> : vector<16x256xf32>
    %49 = tpu.matmul %47, %48, %cst_23 {dimension_numbers = #tpu.dot_dimension_numbers<[1], [0], [0], [1], [0, 0, 1, 1], [], []>} : vector<16x512xbf16>, vector<512x256xbf16>, vector<16x256xf32> -> vector<16x256xf32>
    %c0_24 = arith.constant 0 : index
    %c0_25 = arith.constant 0 : index
    %50 = vector.load %arg5[%c0_24, %c0_25] : memref<1x256xf32, #tpu.memory_space<vmem>>, vector<1x256xf32>
    %51 = vector.broadcast %50 : vector<1x256xf32> to vector<16x256xf32>
    %52 = arith.addf %49, %51 : vector<16x256xf32>
    %c0_26 = arith.constant 0 : index
    %c0_27 = arith.constant 0 : index
    %53 = vector.load %arg6[%c0_26, %c0_27] : memref<16x256xf32, #tpu.memory_space<vmem>>, vector<16x256xf32>
    tpu.vector_store %arg6[%c0_26, %c0_27], %52 {strides = array<i32>} : memref<16x256xf32, #tpu.memory_space<vmem>>, vector<16x256xf32>,
    return
  }
  func.func @transform_0(%arg0: i32) -> (i32, i32) {
    %c0_i32 = arith.constant 0 : i32
    %c0_i32_0 = arith.constant 0 : i32
    return %arg0, %c0_i32 : i32, i32
  }
  func.func @transform_1(%arg0: i32) -> (i32, i32) {
    %c0_i32 = arith.constant 0 : i32
    %c0_i32_0 = arith.constant 0 : i32
    %c0_i32_1 = arith.constant 0 : i32
    return %c0_i32, %c0_i32_0 : i32, i32
  }
  func.func @transform_2(%arg0: i32) -> (i32, i32) {
    %c0_i32 = arith.constant 0 : i32
    %c0_i32_0 = arith.constant 0 : i32
    %c0_i32_1 = arith.constant 0 : i32
    return %c0_i32, %c0_i32_0 : i32, i32
  }
  func.func @transform_3(%arg0: i32) -> (i32, i32) {
    %c0_i32 = arith.constant 0 : i32
    %c0_i32_0 = arith.constant 0 : i32
    %c0_i32_1 = arith.constant 0 : i32
    return %c0_i32, %c0_i32_0 : i32, i32
  }
  func.func @transform_4(%arg0: i32) -> (i32, i32) {
    %c0_i32 = arith.constant 0 : i32
    %c0_i32_0 = arith.constant 0 : i32
    %c0_i32_1 = arith.constant 0 : i32
    return %c0_i32, %c0_i32_0 : i32, i32
  }
  func.func @transform_5(%arg0: i32) -> (i32, i32) {
    %c0_i32 = arith.constant 0 : i32
    %c0_i32_0 = arith.constant 0 : i32
    return %arg0, %c0_i32 : i32, i32
  }
}

</mosaic_0001>

<llo_original>
// kernel: tpu_custom_call.1
$region0: #{tpu_custom_call.1}
  #allocation0 [shape = 'u32[]', space=smem, size = 0x4, offset = 0x4, fixed_abs, tag = 'smem constant byte address 0x4 - core index']
  #allocation1 [shape = 'u32[144,128]{1,0:T(1,128)}', space=vmem, size = 0x12000, scoped, tag = 'internal scratch']
  %s0 = inlined_call_operand.hbm [shape: bf16[32,256], index: 0, kind: input, shape index: {}]
  %s1 = inlined_call_operand.hbm [shape: bf16[256,512], index: 1, kind: input, shape index: {}]
  %s2 = inlined_call_operand.vmem [shape: f32[1,512], index: 2, kind: input, shape index: {}]
  %s3 = inlined_call_operand.hbm [shape: bf16[512,256], index: 3, kind: input, shape index: {}]
  %s4 = inlined_call_operand.vmem [shape: f32[1,256], index: 4, kind: input, shape index: {}]
  %s5 = inlined_call_operand.hbm [shape: f32[32,256], index: 5, kind: output, shape index: {}]
  %s6 = sld [smem:[#allocation0]]
  $region65: #{tpu_custom_call.1} parent=0
    _
  %s8 = ssub.s32 1, %s6
  %s9 = scalar_select 0, %s8, %s6
  $region1: #{tpu_custom_call.1} parent=0
    #allocation2 [shape = 'u8[16384]{0}', space=vmem, size = 0x4000, scoped, tag = 'input window, operand 0']
    #allocation3 [shape = 's32[2]{0}', space=sflag, size = 0x8, scoped, tag = 'scoped memory for tpu_custom_call.1']
    #allocation4 [shape = 's32[2]{0}', space=sflag, size = 0x8, scoped, tag = 'scoped memory for tpu_custom_call.1']
    #allocation5 [shape = 'u8[262144]{0}', space=vmem, size = 0x40000, scoped, tag = 'input window, operand 1, single buffered']
    #allocation6 [shape = 's32[1]{0}', space=sflag, size = 0x4, scoped, tag = 'scoped memory for tpu_custom_call.1']
    #allocation7 [shape = 'u8[262144]{0}', space=vmem, size = 0x40000, scoped, tag = 'input window, operand 3, single buffered']
    #allocation8 [shape = 'u8[32768]{0}', space=vmem, size = 0x8000, scoped, tag = 'output window, operand 0']
    %10 = vsyncpa [#allocation3], 0
    %s11 = scalar_lea.sflag [#allocation3], 1
    %12 = vsyncpa %s11, 0
    %13 = vsyncpa [#allocation6], 0
    %14 = vsyncpa [#allocation4], 0
    %s15 = scalar_lea.sflag [#allocation4], 1
    %16 = vsyncpa %s15, 0
    loop: start=0, step=1, limit=4
    $region2: #{tpu_custom_call.1} parent=1 // loop_pre_header
      _
    $region3: #{tpu_custom_call.1} parent=1 // loop_header
      %s18 = sphi 0, %s22
      %p19 = scmp.ge.s32.totalorder %s18, 4
      %s28 = sphi 0, %s30
      %s31 = sphi 0, %s28
      %s32 = sphi 0, %s31
      %s48 = sphi 0, %s32
      %s52 = sphi 0, %s52
      %s54 = sphi 0, %s52
      %s55 = sphi 0, %s54
      %s69 = sphi 0, %s55
      %s73 = sphi 0, %s73
      %s75 = sphi 0, %s73
      %s76 = sphi 0, %s75
      %s90 = sphi 0, %s76
      %s94 = sphi 0, %s94
      %s96 = sphi 0, %s94
      %s97 = sphi 0, %s96
      %s111 = sphi 0, %s97
      %s115 = sphi 0, %s115
      %s117 = sphi 0, %s115
      %s118 = sphi 0, %s117
      %s132 = sphi 0, %s118
      %s138 = sphi 0, %s140
      %s141 = sphi 0, %s138
      %s142 = sphi 0, %s141
      %s158 = sphi 0, %s142
    $region4: #{tpu_custom_call.1} parent=1 // loop_header_branch
      %21 = sbr.rel (%p19) target = $region8
    $region5: #{tpu_custom_call.1} parent=1 // loop_body
      %s23 = ssub.s32 %s18, 1
      %s24 = ssub.s32 %s18, 2
      %s25 = sadd.s32 %s18, 1
      %s26 = ssub.s32 %s18, %s25
      %p27 = scmp.eq.s32.totalorder %s26, 0
      %s29 = sadd.s32 %s28, 1
      %s30 = scalar_select %p27, %s28, %s29
      %p33 = pneg %p27
      %p34 = scmp.eq.s32.totalorder %s18, 1
      %p35 = por %p33, %p34
      %p36 = scmp.ne.s32.totalorder %s28, %s31
      %p37 = scmp.eq.s32.totalorder %s18, 0
      %p38 = por %p36, %p37
      %p39 = scmp.ne.s32.totalorder %s28, %s31
      %p40 = scmp.eq.s32.totalorder %s23, 1
      %p41 = por %p39, %p40
      %p42 = scmp.ne.s32.totalorder %s31, %s32
      %p43 = scmp.eq.s32.totalorder %s23, 0
      %p44 = por %p42, %p43
      %p45 = scmp.ne.s32.totalorder %s31, %s32
      %p46 = scmp.eq.s32.totalorder %s24, 1
      %p47 = por %p45, %p46
      %p49 = scmp.ne.s32.totalorder %s32, %s48
      %p50 = scmp.eq.s32.totalorder %s24, 0
      %p51 = por %p49, %p50
      %s53 = sadd.s32 %s52, 1
      %p56 = scmp.eq.s32.totalorder %s18, 1
      %p57 = scmp.ne.s32.totalorder %s52, %s54
      %p58 = scmp.eq.s32.totalorder %s18, 0
      %p59 = por %p57, %p58
      %p60 = scmp.ne.s32.totalorder %s52, %s54
      %p61 = scmp.eq.s32.totalorder %s23, 1
      %p62 = por %p60, %p61
      %p63 = scmp.ne.s32.totalorder %s54, %s55
      %p64 = scmp.eq.s32.totalorder %s23, 0
      %p65 = por %p63, %p64
      %p66 = scmp.ne.s32.totalorder %s54, %s55
      %p67 = scmp.eq.s32.totalorder %s24, 1
      %p68 = por %p66, %p67
      %p70 = scmp.ne.s32.totalorder %s55, %s69
      %p71 = scmp.eq.s32.totalorder %s24, 0
      %p72 = por %p70, %p71
      %s74 = sadd.s32 %s73, 1
      %p77 = scmp.eq.s32.totalorder %s18, 1
      %p78 = scmp.ne.s32.totalorder %s73, %s75
      %p79 = scmp.eq.s32.totalorder %s18, 0
      %p80 = por %p78, %p79
      %p81 = scmp.ne.s32.totalorder %s73, %s75
      %p82 = scmp.eq.s32.totalorder %s23, 1
      %p83 = por %p81, %p82
      %p84 = scmp.ne.s32.totalorder %s75, %s76
      %p85 = scmp.eq.s32.totalorder %s23, 0
      %p86 = por %p84, %p85
      %p87 = scmp.ne.s32.totalorder %s75, %s76
      %p88 = scmp.eq.s32.totalorder %s24, 1
      %p89 = por %p87, %p88
      %p91 = scmp.ne.s32.totalorder %s76, %s90
      %p92 = scmp.eq.s32.totalorder %s24, 0
      %p93 = por %p91, %p92
      %s95 = sadd.s32 %s94, 1
      %p98 = scmp.eq.s32.totalorder %s18, 1
      %p99 = scmp.ne.s32.totalorder %s94, %s96
      %p100 = scmp.eq.s32.totalorder %s18, 0
      %p101 = por %p99, %p100
      %p102 = scmp.ne.s32.totalorder %s94, %s96
      %p103 = scmp.eq.s32.totalorder %s23, 1
      %p104 = por %p102, %p103
      %p105 = scmp.ne.s32.totalorder %s96, %s97
      %p106 = scmp.eq.s32.totalorder %s23, 0
      %p107 = por %p105, %p106
      %p108 = scmp.ne.s32.totalorder %s96, %s97
      %p109 = scmp.eq.s32.totalorder %s24, 1
      %p110 = por %p108, %p109
      %p112 = scmp.ne.s32.totalorder %s97, %s111
      %p113 = scmp.eq.s32.totalorder %s24, 0
      %p114 = por %p112, %p113
      %s116 = sadd.s32 %s115, 1
      %p119 = scmp.eq.s32.totalorder %s18, 1
      %p120 = scmp.ne.s32.totalorder %s115, %s117
      %p121 = scmp.eq.s32.totalorder %s18, 0
      %p122 = por %p120, %p121
      %p123 = scmp.ne.s32.totalorder %s115, %s117
      %p124 = scmp.eq.s32.totalorder %s23, 1
      %p125 = por %p123, %p124
      %p126 = scmp.ne.s32.totalorder %s117, %s118
      %p127 = scmp.eq.s32.totalorder %s23, 0
      %p128 = por %p126, %p127
      %p129 = scmp.ne.s32.totalorder %s117, %s118
      %p130 = scmp.eq.s32.totalorder %s24, 1
      %p131 = por %p129, %p130
      %p133 = scmp.ne.s32.totalorder %s118, %s132
      %p134 = scmp.eq.s32.totalorder %s24, 0
      %p135 = por %p133, %p134
      %s136 = ssub.s32 %s18, %s25
      %p137 = scmp.eq.s32.totalorder %s136, 0
      %s139 = sadd.s32 %s138, 1
      %s140 = scalar_select %p137, %s138, %s139
      %p143 = pneg %p137
      %p144 = scmp.eq.s32.totalorder %s18, 1
      %p145 = por %p143, %p144
      %p146 = scmp.ne.s32.totalorder %s138, %s141
      %p147 = scmp.eq.s32.totalorder %s18, 0
      %p148 = por %p146, %p147
      %p149 = scmp.ne.s32.totalorder %s138, %s141
      %p150 = scmp.eq.s32.totalorder %s23, 1
      %p151 = por %p149, %p150
      %p152 = scmp.ne.s32.totalorder %s141, %s142
      %p153 = scmp.eq.s32.totalorder %s23, 0
      %p154 = por %p152, %p153
      %p155 = scmp.ne.s32.totalorder %s141, %s142
      %p156 = scmp.eq.s32.totalorder %s24, 1
      %p157 = por %p155, %p156
      %p159 = scmp.ne.s32.totalorder %s142, %s158
      %p160 = scmp.eq.s32.totalorder %s24, 0
      %p161 = por %p159, %p160
      %p162 = scmp.le.s32.totalorder 1, %s18
      %p163 = scmp.lt.s32.totalorder %s18, 3
      %p164 = pnand %p162, %p163
      %p165 = pneg %p164
      // Predicated region
      $region9: #{tpu_custom_call.1} parent=5 // pred_check
        _
      $region10: #{tpu_custom_call.1} parent=5 // pred_check_branch
        %167 = sbr.rel (%p164) target = $region12
      $region11: #{tpu_custom_call.1} parent=5 // pred_region
        %s168 = ssub.s32 %s18, 1
        // Predicated region
        $region13: #{tpu_custom_call.1} parent=11 // pred_check
          %p169 = pneg %p65
        $region14: #{tpu_custom_call.1} parent=11 // pred_check_branch
          %171 = sbr.rel (%p169) target = $region16
        $region15: #{tpu_custom_call.1} parent=11 // pred_region
          %s173 = ssub.s32 8192, 8192
          %174 = vsyncadd [#allocation6], %s173
          %s175 = sshll.u32 [#allocation5], 4
          %s176 = int_to_ptr.vmem [resolvable:$true] %s175
          %181 = dma.hbm_to_vmem [thread:$0]  %s1, 8192, %s176, [#allocation6], 256, 256, 16
        $region16: #{tpu_custom_call.1} parent=11 // pred_fallthru
          _
        // Predicated region
        $region17: #{tpu_custom_call.1} parent=11 // pred_check
          %p182 = pneg %p86
        $region18: #{tpu_custom_call.1} parent=11 // pred_check_branch
          %184 = sbr.rel (%p182) target = $region20
        $region19: #{tpu_custom_call.1} parent=11 // pred_region
          _
        $region20: #{tpu_custom_call.1} parent=11 // pred_fallthru
          _
        // Predicated region
        $region21: #{tpu_custom_call.1} parent=11 // pred_check
          %p185 = pneg %p107
        $region22: #{tpu_custom_call.1} parent=11 // pred_check_branch
          %187 = sbr.rel (%p185) target = $region24
        $region23: #{tpu_custom_call.1} parent=11 // pred_region
          %s189 = ssub.s32 8192, 8192
          %190 = vsyncadd [#allocation6], %s189
          %s191 = sshll.u32 [#allocation7], 4
          %s192 = int_to_ptr.vmem [resolvable:$true] %s191
          %197 = dma.hbm_to_vmem [thread:$0]  %s3, 8192, %s192, [#allocation6], 128, 128, 8
        $region24: #{tpu_custom_call.1} parent=11 // pred_fallthru
          _
        // Predicated region
        $region25: #{tpu_custom_call.1} parent=11 // pred_check
          %p198 = pneg %p128
        $region26: #{tpu_custom_call.1} parent=11 // pred_check_branch
          %200 = sbr.rel (%p198) target = $region28
        $region27: #{tpu_custom_call.1} parent=11 // pred_region
          _
        $region28: #{tpu_custom_call.1} parent=11 // pred_fallthru
          _
      $region12: #{tpu_custom_call.1} parent=5 // pred_fallthru
        _
      %p201 = scmp.lt.s32.totalorder %s18, 2
      // Predicated region
      $region29: #{tpu_custom_call.1} parent=5 // pred_check
        %p202 = pneg %p201
      $region30: #{tpu_custom_call.1} parent=5 // pred_check_branch
        %204 = sbr.rel (%p202) target = $region32
      $region31: #{tpu_custom_call.1} parent=5 // pred_region
        // Predicated region
        $region33: #{tpu_custom_call.1} parent=31 // pred_check
          %p205 = pneg %p38
        $region34: #{tpu_custom_call.1} parent=31 // pred_check_branch
          %207 = sbr.rel (%p205) target = $region36
        $region35: #{tpu_custom_call.1} parent=31 // pred_region
          %s208 = sand.u32 %s28, 1
          %s209 = scalar_lea.sflag [#allocation3], %s208
          %s210 = sand.u32 %s28, 1
          %s211 = smul.addr %s210, 16
          %s212 = scalar_lea.vmem [#allocation2], %s211
          %s213 = smul.u32 2, %s18
          %s215 = ssub.s32 256, 256
          %216 = vsyncadd %s209, %s215
          %s217 = smul.addr %s213, 2
          %s218 = smul.addr %s217, 64
          %s219 = scalar_lea.hbm %s0, %s218
          %s220 = sshll.u32 %s212, 4
          %s221 = int_to_ptr.vmem [resolvable:$true] %s220
          %226 = dma.hbm_to_vmem [thread:$0]  %s219, 256, %s221, %s209, 128, 128, 8
        $region36: #{tpu_custom_call.1} parent=31 // pred_fallthru
          _
      $region32: #{tpu_custom_call.1} parent=5 // pred_fallthru
        _
      %p227 = scmp.le.s32.totalorder 1, %s18
      %p228 = scmp.lt.s32.totalorder %s18, 3
      %p229 = pnand %p227, %p228
      %p230 = pneg %p229
      // Predicated region
      $region37: #{tpu_custom_call.1} parent=5 // pred_check
        _
      $region38: #{tpu_custom_call.1} parent=5 // pred_check_branch
        %232 = sbr.rel (%p229) target = $region40
      $region39: #{tpu_custom_call.1} parent=5 // pred_region
        %s233 = ssub.s32 %s18, 1
        %s234 = sand.u32 %s31, 1
        %s235 = scalar_lea.sflag [#allocation3], %s234
        %s236 = sand.u32 %s31, 1
        %s237 = smul.addr %s236, 16
        %s238 = scalar_lea.vmem [#allocation2], %s237
        // Predicated region
        $region41: #{tpu_custom_call.1} parent=39 // pred_check
          %p239 = pneg %p44
        $region42: #{tpu_custom_call.1} parent=39 // pred_check_branch
          %241 = sbr.rel (%p239) target = $region44
        $region43: #{tpu_custom_call.1} parent=39 // pred_region
          %242 = dma.done %s235, 256
        $region44: #{tpu_custom_call.1} parent=39 // pred_fallthru
          _
        // Predicated region
        $region45: #{tpu_custom_call.1} parent=39 // pred_check
          %p243 = pneg %p65
        $region46: #{tpu_custom_call.1} parent=39 // pred_check_branch
          %245 = sbr.rel (%p243) target = $region48
        $region47: #{tpu_custom_call.1} parent=39 // pred_region
          %246 = dma.done [#allocation6], 8192
        $region48: #{tpu_custom_call.1} parent=39 // pred_fallthru
          _
        // Predicated region
        $region49: #{tpu_custom_call.1} parent=39 // pred_check
          %p247 = pneg %p107
        $region50: #{tpu_custom_call.1} parent=39 // pred_check_branch
          %249 = sbr.rel (%p247) target = $region52
        $region51: #{tpu_custom_call.1} parent=39 // pred_region
          %250 = dma.done [#allocation6], 8192
        $region52: #{tpu_custom_call.1} parent=39 // pred_fallthru
          _
        %s251 = sand.u32 %s31, 1
        %s252 = scalar_lea.sflag [#allocation3], %s251
        %s253 = sand.u32 %s31, 1
        %s254 = smul.addr %s253, 16
        %s255 = scalar_lea.vmem [#allocation2], %s254
        %p256 = pneg %p44
        %p257 = pneg %p41
        %p258 = pneg %p65
        %p259 = pneg %p62
        %p260 = pneg %p86
        %p261 = pneg %p83
        %p262 = pneg %p107
        %p263 = pneg %p104
        %p264 = pneg %p128
        %p265 = pneg %p125
        %p266 = pneg %p154
        %p267 = pneg %p151
        %s268 = sand.u32 %s141, 1
        %s269 = scalar_lea.sflag [#allocation4], %s268
        %s270 = sand.u32 %s141, 1
        %s271 = smul.addr %s270, 32
        %s272 = scalar_lea.vmem [#allocation8], %s271
        %s273 = smul.u32 2, %s23
        %s274 = smul.u32 2, %s23
        %v275 = vld [vmem:[%s238] sm:$0xff]
        %v276 = vld [vmem:[%s238 + $0x8] sm:$0xff]
        %v277 = vld [vmem:[#allocation5] sm:$0xff]
        %v278 = vld [vmem:[#allocation5 + $0x8] sm:$0xff]
        %v279 = vld [vmem:[#allocation5 + $0x10] sm:$0xff]
        %v280 = vld [vmem:[#allocation5 + $0x18] sm:$0xff]
        %v281 = vld [vmem:[#allocation5 + $0x20] sm:$0xff]
        %v282 = vld [vmem:[#allocation5 + $0x28] sm:$0xff]
        %v283 = vld [vmem:[#allocation5 + $0x30] sm:$0xff]
        %v284 = vld [vmem:[#allocation5 + $0x38] sm:$0xff]
        %v285 = vld [vmem:[#allocation5 + $0x40] sm:$0xff]
        %v286 = vld [vmem:[#allocation5 + $0x48] sm:$0xff]
        %v287 = vld [vmem:[#allocation5 + $0x50] sm:$0xff]
        %v288 = vld [vmem:[#allocation5 + $0x58] sm:$0xff]
        %v289 = vld [vmem:[#allocation5 + $0x60] sm:$0xff]
        %v290 = vld [vmem:[#allocation5 + $0x68] sm:$0xff]
        %v291 = vld [vmem:[#allocation5 + $0x70] sm:$0xff]
        %v292 = vld [vmem:[#allocation5 + $0x78] sm:$0xff]
        %v293 = vld [vmem:[#allocation5 + $0x80] sm:$0xff]
        %v294 = vld [vmem:[#allocation5 + $0x88] sm:$0xff]
        %v295 = vld [vmem:[#allocation5 + $0x90] sm:$0xff]
        %v296 = vld [vmem:[#allocation5 + $0x98] sm:$0xff]
        %v297 = vld [vmem:[#allocation5 + $0xa0] sm:$0xff]
        %v298 = vld [vmem:[#allocation5 + $0xa8] sm:$0xff]
        %v299 = vld [vmem:[#allocation5 + $0xb0] sm:$0xff]
        %v300 = vld [vmem:[#allocation5 + $0xb8] sm:$0xff]
        %v301 = vld [vmem:[#allocation5 + $0xc0] sm:$0xff]
        %v302 = vld [vmem:[#allocation5 + $0xc8] sm:$0xff]
        %v303 = vld [vmem:[#allocation5 + $0xd0] sm:$0xff]
        %v304 = vld [vmem:[#allocation5 + $0xd8] sm:$0xff]
        %v305 = vld [vmem:[#allocation5 + $0xe0] sm:$0xff]
        %v306 = vld [vmem:[#allocation5 + $0xe8] sm:$0xff]
        %v307 = vld [vmem:[#allocation5 + $0xf0] sm:$0xff]
        %v308 = vld [vmem:[#allocation5 + $0xf8] sm:$0xff]
        %v309 = vld [vmem:[#allocation5 + $0x100] sm:$0xff]
        %v310 = vld [vmem:[#allocation5 + $0x108] sm:$0xff]
        %v311 = vld [vmem:[#allocation5 + $0x110] sm:$0xff]
        %v312 = vld [vmem:[#allocation5 + $0x118] sm:$0xff]
        %v313 = vld [vmem:[#allocation5 + $0x120] sm:$0xff]
        %v314 = vld [vmem:[#allocation5 + $0x128] sm:$0xff]
        %v315 = vld [vmem:[#allocation5 + $0x130] sm:$0xff]
        %v316 = vld [vmem:[#allocation5 + $0x138] sm:$0xff]
        %v317 = vld [vmem:[#allocation5 + $0x140] sm:$0xff]
        %v318 = vld [vmem:[#allocation5 + $0x148] sm:$0xff]
        %v319 = vld [vmem:[#allocation5 + $0x150] sm:$0xff]
        %v320 = vld [vmem:[#allocation5 + $0x158] sm:$0xff]
        %v321 = vld [vmem:[#allocation5 + $0x160] sm:$0xff]
        %v322 = vld [vmem:[#allocation5 + $0x168] sm:$0xff]
        %v323 = vld [vmem:[#allocation5 + $0x170] sm:$0xff]
        %v324 = vld [vmem:[#allocation5 + $0x178] sm:$0xff]
        %v325 = vld [vmem:[#allocation5 + $0x180] sm:$0xff]
        %v326 = vld [vmem:[#allocation5 + $0x188] sm:$0xff]
        %v327 = vld [vmem:[#allocation5 + $0x190] sm:$0xff]
        %v328 = vld [vmem:[#allocation5 + $0x198] sm:$0xff]
        %v329 = vld [vmem:[#allocation5 + $0x1a0] sm:$0xff]
        %v330 = vld [vmem:[#allocation5 + $0x1a8] sm:$0xff]
        %v331 = vld [vmem:[#allocation5 + $0x1b0] sm:$0xff]
        %v332 = vld [vmem:[#allocation5 + $0x1b8] sm:$0xff]
        %v333 = vld [vmem:[#allocation5 + $0x1c0] sm:$0xff]
        %v334 = vld [vmem:[#allocation5 + $0x1c8] sm:$0xff]
        %v335 = vld [vmem:[#allocation5 + $0x1d0] sm:$0xff]
        %v336 = vld [vmem:[#allocation5 + $0x1d8] sm:$0xff]
        %v337 = vld [vmem:[#allocation5 + $0x1e0] sm:$0xff]
        %v338 = vld [vmem:[#allocation5 + $0x1e8] sm:$0xff]
        %v339 = vld [vmem:[#allocation5 + $0x1f0] sm:$0xff]
        %v340 = vld [vmem:[#allocation5 + $0x1f8] sm:$0xff]
        %v341 = vld [vmem:[%s2] sm:$0xf]
        %v343 = vlaneseq
        %v344 = vshrl.u32 %v343, 7
        %v345 = vsub.s32 0, %v344
        %v346 = vrot.slane %v341, %v345
        %v347 = vlaneseq
        %v348 = vshrl.u32 %v347, 7
        %v349 = vsub.s32 1, %v348
        %v350 = vrot.slane %v341, %v349
        %v351 = vlaneseq
        %v352 = vshrl.u32 %v351, 7
        %v353 = vsub.s32 2, %v352
        %v354 = vrot.slane %v341, %v353
        %v355 = vlaneseq
        %v356 = vshrl.u32 %v355, 7
        %v357 = vsub.s32 3, %v356
        %v358 = vrot.slane %v341, %v357
        %v365 = vunpack.c.l.b16 %v275
        %v366 = vunpack.c.h.b16 %v275
        %v367 = vunpack.c.l.b16 %v276
        %v368 = vunpack.c.h.b16 %v276
        %v369 = vpack.c.b16 %v367, %v365
        %v370 = vpack.c.b16 %v368, %v366
        %v437 = vunpack.c.l.b16 %v277
        %v438 = vunpack.c.h.b16 %v277
        %v439 = vunpack.c.l.b16 %v278
        %v440 = vunpack.c.h.b16 %v278
        %v441 = vunpack.c.l.b16 %v279
        %v442 = vunpack.c.h.b16 %v279
        %v443 = vunpack.c.l.b16 %v280
        %v444 = vunpack.c.h.b16 %v280
        %v445 = vunpack.c.l.b16 %v281
        %v446 = vunpack.c.h.b16 %v281
        %v447 = vunpack.c.l.b16 %v282
        %v448 = vunpack.c.h.b16 %v282
        %v449 = vunpack.c.l.b16 %v283
        %v450 = vunpack.c.h.b16 %v283
        %v451 = vunpack.c.l.b16 %v284
        %v452 = vunpack.c.h.b16 %v284
        %v453 = vunpack.c.l.b16 %v285
        %v454 = vunpack.c.h.b16 %v285
        %v455 = vunpack.c.l.b16 %v286
        %v456 = vunpack.c.h.b16 %v286
        %v457 = vunpack.c.l.b16 %v287
        %v458 = vunpack.c.h.b16 %v287
        %v459 = vunpack.c.l.b16 %v288
        %v460 = vunpack.c.h.b16 %v288
        %v461 = vunpack.c.l.b16 %v289
        %v462 = vunpack.c.h.b16 %v289
        %v463 = vunpack.c.l.b16 %v290
        %v464 = vunpack.c.h.b16 %v290
        %v465 = vunpack.c.l.b16 %v291
        %v466 = vunpack.c.h.b16 %v291
        %v467 = vunpack.c.l.b16 %v292
        %v468 = vunpack.c.h.b16 %v292
        %v469 = vunpack.c.l.b16 %v293
        %v470 = vunpack.c.h.b16 %v293
        %v471 = vunpack.c.l.b16 %v294
        %v472 = vunpack.c.h.b16 %v294
        %v473 = vunpack.c.l.b16 %v295
        %v474 = vunpack.c.h.b16 %v295
        %v475 = vunpack.c.l.b16 %v296
        %v476 = vunpack.c.h.b16 %v296
        %v477 = vunpack.c.l.b16 %v297
        %v478 = vunpack.c.h.b16 %v297
        %v479 = vunpack.c.l.b16 %v298
        %v480 = vunpack.c.h.b16 %v298
        %v481 = vunpack.c.l.b16 %v299
        %v482 = vunpack.c.h.b16 %v299
        %v483 = vunpack.c.l.b16 %v300
        %v484 = vunpack.c.h.b16 %v300
        %v485 = vunpack.c.l.b16 %v301
        %v486 = vunpack.c.h.b16 %v301
        %v487 = vunpack.c.l.b16 %v302
        %v488 = vunpack.c.h.b16 %v302
        %v489 = vunpack.c.l.b16 %v303
        %v490 = vunpack.c.h.b16 %v303
        %v491 = vunpack.c.l.b16 %v304
        %v492 = vunpack.c.h.b16 %v304
        %v493 = vunpack.c.l.b16 %v305
        %v494 = vunpack.c.h.b16 %v305
        %v495 = vunpack.c.l.b16 %v306
        %v496 = vunpack.c.h.b16 %v306
        %v497 = vunpack.c.l.b16 %v307
        %v498 = vunpack.c.h.b16 %v307
        %v499 = vunpack.c.l.b16 %v308
        %v500 = vunpack.c.h.b16 %v308
        %v501 = vunpack.c.l.b16 %v309
        %v502 = vunpack.c.h.b16 %v309
        %v503 = vunpack.c.l.b16 %v310
        %v504 = vunpack.c.h.b16 %v310
        %v505 = vunpack.c.l.b16 %v311
        %v506 = vunpack.c.h.b16 %v311
        %v507 = vunpack.c.l.b16 %v312
        %v508 = vunpack.c.h.b16 %v312
        %v509 = vunpack.c.l.b16 %v313
        %v510 = vunpack.c.h.b16 %v313
        %v511 = vunpack.c.l.b16 %v314
        %v512 = vunpack.c.h.b16 %v314
        %v513 = vunpack.c.l.b16 %v315
        %v514 = vunpack.c.h.b16 %v315
        %v515 = vunpack.c.l.b16 %v316
        %v516 = vunpack.c.h.b16 %v316
        %v517 = vunpack.c.l.b16 %v317
        %v518 = vunpack.c.h.b16 %v317
        %v519 = vunpack.c.l.b16 %v318
        %v520 = vunpack.c.h.b16 %v318
        %v521 = vunpack.c.l.b16 %v319
        %v522 = vunpack.c.h.b16 %v319
        %v523 = vunpack.c.l.b16 %v320
        %v524 = vunpack.c.h.b16 %v320
        %v525 = vunpack.c.l.b16 %v321
        %v526 = vunpack.c.h.b16 %v321
        %v527 = vunpack.c.l.b16 %v322
        %v528 = vunpack.c.h.b16 %v322
        %v529 = vunpack.c.l.b16 %v323
        %v530 = vunpack.c.h.b16 %v323
        %v531 = vunpack.c.l.b16 %v324
        %v532 = vunpack.c.h.b16 %v324
        %v533 = vunpack.c.l.b16 %v325
        %v534 = vunpack.c.h.b16 %v325
        %v535 = vunpack.c.l.b16 %v326
        %v536 = vunpack.c.h.b16 %v326
        %v537 = vunpack.c.l.b16 %v327
        %v538 = vunpack.c.h.b16 %v327
        %v539 = vunpack.c.l.b16 %v328
        %v540 = vunpack.c.h.b16 %v328
        %v541 = vunpack.c.l.b16 %v329
        %v542 = vunpack.c.h.b16 %v329
        %v543 = vunpack.c.l.b16 %v330
        %v544 = vunpack.c.h.b16 %v330
        %v545 = vunpack.c.l.b16 %v331
        %v546 = vunpack.c.h.b16 %v331
        %v547 = vunpack.c.l.b16 %v332
        %v548 = vunpack.c.h.b16 %v332
        %v549 = vunpack.c.l.b16 %v333
        %v550 = vunpack.c.h.b16 %v333
        %v551 = vunpack.c.l.b16 %v334
        %v552 = vunpack.c.h.b16 %v334
        %v553 = vunpack.c.l.b16 %v335
        %v554 = vunpack.c.h.b16 %v335
        %v555 = vunpack.c.l.b16 %v336
        %v556 = vunpack.c.h.b16 %v336
        %v557 = vunpack.c.l.b16 %v337
        %v558 = vunpack.c.h.b16 %v337
        %v559 = vunpack.c.l.b16 %v338
        %v560 = vunpack.c.h.b16 %v338
        %v561 = vunpack.c.l.b16 %v339
        %v562 = vunpack.c.h.b16 %v339
        %v563 = vunpack.c.l.b16 %v340
        %v564 = vunpack.c.h.b16 %v340
        %v565 = vpack.c.b16 %v441, %v437
        %v566 = vpack.c.b16 %v442, %v438
        %v567 = vpack.c.b16 %v443, %v439
        %v568 = vpack.c.b16 %v444, %v440
        %v569 = vpack.c.b16 %v449, %v445
        %v570 = vpack.c.b16 %v450, %v446
        %v571 = vpack.c.b16 %v451, %v447
        %v572 = vpack.c.b16 %v452, %v448
        %v573 = vpack.c.b16 %v457, %v453
        %v574 = vpack.c.b16 %v458, %v454
        %v575 = vpack.c.b16 %v459, %v455
        %v576 = vpack.c.b16 %v460, %v456
        %v577 = vpack.c.b16 %v465, %v461
        %v578 = vpack.c.b16 %v466, %v462
        %v579 = vpack.c.b16 %v467, %v463
        %v580 = vpack.c.b16 %v468, %v464
        %v581 = vpack.c.b16 %v473, %v469
        %v582 = vpack.c.b16 %v474, %v470
        %v583 = vpack.c.b16 %v475, %v471
        %v584 = vpack.c.b16 %v476, %v472
        %v585 = vpack.c.b16 %v481, %v477
        %v586 = vpack.c.b16 %v482, %v478
        %v587 = vpack.c.b16 %v483, %v479
        %v588 = vpack.c.b16 %v484, %v480
        %v589 = vpack.c.b16 %v489, %v485
        %v590 = vpack.c.b16 %v490, %v486
        %v591 = vpack.c.b16 %v491, %v487
        %v592 = vpack.c.b16 %v492, %v488
        %v593 = vpack.c.b16 %v497, %v493
        %v594 = vpack.c.b16 %v498, %v494
        %v595 = vpack.c.b16 %v499, %v495
        %v596 = vpack.c.b16 %v500, %v496
        %v597 = vpack.c.b16 %v505, %v501
        %v598 = vpack.c.b16 %v506, %v502
        %v599 = vpack.c.b16 %v507, %v503
        %v600 = vpack.c.b16 %v508, %v504
        %v601 = vpack.c.b16 %v513, %v509
        %v602 = vpack.c.b16 %v514, %v510
        %v603 = vpack.c.b16 %v515, %v511
        %v604 = vpack.c.b16 %v516, %v512
        %v605 = vpack.c.b16 %v521, %v517
        %v606 = vpack.c.b16 %v522, %v518
        %v607 = vpack.c.b16 %v523, %v519
        %v608 = vpack.c.b16 %v524, %v520
        %v609 = vpack.c.b16 %v529, %v525
        %v610 = vpack.c.b16 %v530, %v526
        %v611 = vpack.c.b16 %v531, %v527
        %v612 = vpack.c.b16 %v532, %v528
        %v613 = vpack.c.b16 %v537, %v533
        %v614 = vpack.c.b16 %v538, %v534
        %v615 = vpack.c.b16 %v539, %v535
        %v616 = vpack.c.b16 %v540, %v536
        %v617 = vpack.c.b16 %v545, %v541
        %v618 = vpack.c.b16 %v546, %v542
        %v619 = vpack.c.b16 %v547, %v543
        %v620 = vpack.c.b16 %v548, %v544
        %v621 = vpack.c.b16 %v553, %v549
        %v622 = vpack.c.b16 %v554, %v550
        %v623 = vpack.c.b16 %v555, %v551
        %v624 = vpack.c.b16 %v556, %v552
        %v625 = vpack.c.b16 %v561, %v557
        %v626 = vpack.c.b16 %v562, %v558
        %v627 = vpack.c.b16 %v563, %v559
        %v628 = vpack.c.b16 %v564, %v560
        %693 = vmatprep.subr.bf16.mxu0 %v566
        %694 = vmatpush1.bf16.msra.mxu0 %v565
        %695 = vmatprep.subr.bf16.mxu0 %v570
        %696 = vmatpush1.bf16.msra.mxu0 %v569
        %697 = vmatprep.subr.bf16.mxu0 %v574
        %698 = vmatpush1.bf16.msra.mxu0 %v573
        %699 = vmatprep.subr.bf16.mxu0 %v578
        %700 = vmatpush1.bf16.msra.mxu0 %v577
        %701 = vmatprep.subr.bf16.mxu0 %v582
        %702 = vmatpush1.bf16.msra.mxu0 %v581
        %703 = vmatprep.subr.bf16.mxu0 %v586
        %704 = vmatpush1.bf16.msra.mxu0 %v585
        %705 = vmatprep.subr.bf16.mxu0 %v590
        %706 = vmatpush1.bf16.msra.mxu0 %v589
        %707 = vmatprep.subr.bf16.mxu0 %v594
        %708 = vmatpush1.bf16.msra.mxu0 %v593
        %709 = vmatprep.subr.bf16.mxu0 %v598
        %710 = vmatpush1.bf16.msra.mxu0 %v597
        %711 = vmatprep.subr.bf16.mxu0 %v602
        %712 = vmatpush1.bf16.msra.mxu0 %v601
        %713 = vmatprep.subr.bf16.mxu0 %v606
        %714 = vmatpush1.bf16.msra.mxu0 %v605
        %715 = vmatprep.subr.bf16.mxu0 %v610
        %716 = vmatpush1.bf16.msra.mxu0 %v609
        %717 = vmatprep.subr.bf16.mxu0 %v614
        %718 = vmatpush1.bf16.msra.mxu0 %v613
        %719 = vmatprep.subr.bf16.mxu0 %v618
        %720 = vmatpush1.bf16.msra.mxu0 %v617
        %721 = vmatprep.subr.bf16.mxu0 %v622
        %722 = vmatpush1.bf16.msra.mxu0 %v621
        %723 = vmatprep.subr.bf16.mxu0 %v626
        %724 = vmatpush1.bf16.msra.mxu0 %v625
        %725 = vmatprep.mubr.bf16.mxu0 %v370
        %726 = vmatmul.mubr.bf16.gmra.mrb[0].mxu0 %v369
        %v727 = vpop.f32.mrb[0].mxu0
        %v728 = vadd.f32 %v346, %v727
        %v729 = vpop.f32.mrb[0].mxu0
        %v730 = vadd.f32 %v350, %v729
        %v731 = vpop.f32.mrb[0].mxu0
        %v732 = vadd.f32 %v346, %v731
        %v733 = vpop.f32.mrb[0].mxu0
        %v734 = vadd.f32 %v350, %v733
        %735 = vdwg.mxu0
        %736 = vmatprep.subr.bf16.mxu0 %v568
        %737 = vmatpush1.bf16.msra.mxu0 %v567
        %738 = vmatprep.subr.bf16.mxu0 %v572
        %739 = vmatpush1.bf16.msra.mxu0 %v571
        %740 = vmatprep.subr.bf16.mxu0 %v576
        %741 = vmatpush1.bf16.msra.mxu0 %v575
        %742 = vmatprep.subr.bf16.mxu0 %v580
        %743 = vmatpush1.bf16.msra.mxu0 %v579
        %744 = vmatprep.subr.bf16.mxu0 %v584
        %745 = vmatpush1.bf16.msra.mxu0 %v583
        %746 = vmatprep.subr.bf16.mxu0 %v588
        %747 = vmatpush1.bf16.msra.mxu0 %v587
        %748 = vmatprep.subr.bf16.mxu0 %v592
        %749 = vmatpush1.bf16.msra.mxu0 %v591
        %750 = vmatprep.subr.bf16.mxu0 %v596
        %751 = vmatpush1.bf16.msra.mxu0 %v595
        %752 = vmatprep.subr.bf16.mxu0 %v600
        %753 = vmatpush1.bf16.msra.mxu0 %v599
        %754 = vmatprep.subr.bf16.mxu0 %v604
        %755 = vmatpush1.bf16.msra.mxu0 %v603
        %756 = vmatprep.subr.bf16.mxu0 %v608
        %757 = vmatpush1.bf16.msra.mxu0 %v607
        %758 = vmatprep.subr.bf16.mxu0 %v612
        %759 = vmatpush1.bf16.msra.mxu0 %v611
        %760 = vmatprep.subr.bf16.mxu0 %v616
        %761 = vmatpush1.bf16.msra.mxu0 %v615
        %762 = vmatprep.subr.bf16.mxu0 %v620
        %763 = vmatpush1.bf16.msra.mxu0 %v619
        %764 = vmatprep.subr.bf16.mxu0 %v624
        %765 = vmatpush1.bf16.msra.mxu0 %v623
        %766 = vmatprep.subr.bf16.mxu0 %v628
        %767 = vmatpush1.bf16.msra.mxu0 %v627
        %768 = vmatprep.mubr.bf16.mxu0 %v370
        %769 = vmatmul.mubr.bf16.gmra.mrb[0].mxu0 %v369
        %v770 = vpop.f32.mrb[0].mxu0
        %v771 = vadd.f32 %v354, %v770
        %v772 = vpop.f32.mrb[0].mxu0
        %v773 = vadd.f32 %v358, %v772
        %v774 = vpop.f32.mrb[0].mxu0
        %v775 = vadd.f32 %v354, %v774
        %v776 = vpop.f32.mrb[0].mxu0
        %v777 = vadd.f32 %v358, %v776
        %778 = vdwg.mxu0
        %v779 = vmul.f32 %v728, 0.5
        %v780 = vmul.f32 %v730, 0.5
        %v781 = vmul.f32 %v771, 0.5
        %v782 = vmul.f32 %v773, 0.5
        %v783 = vmul.f32 %v732, 0.5
        %v784 = vmul.f32 %v734, 0.5
        %v785 = vmul.f32 %v775, 0.5
        %v786 = vmul.f32 %v777, 0.5
        %v787 = vmul.f32 %v728, 0.70710677
        %v788 = vmul.f32 %v730, 0.70710677
        %v789 = vmul.f32 %v771, 0.70710677
        %v790 = vmul.f32 %v773, 0.70710677
        %v791 = vmul.f32 %v732, 0.70710677
        %v792 = vmul.f32 %v734, 0.70710677
        %v793 = vmul.f32 %v775, 0.70710677
        %v794 = vmul.f32 %v777, 0.70710677
        %vm795 = vcmp.ge.f32.partialorder %v787, 0.0
        %vm796 = vcmp.ge.f32.partialorder %v788, 0.0
        %vm797 = vcmp.ge.f32.partialorder %v789, 0.0
        %vm798 = vcmp.ge.f32.partialorder %v790, 0.0
        %vm799 = vcmp.ge.f32.partialorder %v791, 0.0
        %vm800 = vcmp.ge.f32.partialorder %v792, 0.0
        %vm801 = vcmp.ge.f32.partialorder %v793, 0.0
        %vm802 = vcmp.ge.f32.partialorder %v794, 0.0
        %v803 = vsel %vm795, 1.0, -1.0
        %v804 = vsel %vm796, 1.0, -1.0
        %v805 = vsel %vm797, 1.0, -1.0
        %v806 = vsel %vm798, 1.0, -1.0
        %v807 = vsel %vm799, 1.0, -1.0
        %v808 = vsel %vm800, 1.0, -1.0
        %v809 = vsel %vm801, 1.0, -1.0
        %v810 = vsel %vm802, 1.0, -1.0
        %v811 = vand.u32 2147483647, %v787
        %v812 = vand.u32 2147483647, %v788
        %v813 = vand.u32 2147483647, %v789
        %v814 = vand.u32 2147483647, %v790
        %v815 = vand.u32 2147483647, %v791
        %v816 = vand.u32 2147483647, %v792
        %v817 = vand.u32 2147483647, %v793
        %v818 = vand.u32 2147483647, %v794
        %v819 = vmul.f32 %v811, 0.3275911
        %v820 = vmul.f32 %v812, 0.3275911
        %v821 = vmul.f32 %v813, 0.3275911
        %v822 = vmul.f32 %v814, 0.3275911
        %v823 = vmul.f32 %v815, 0.3275911
        %v824 = vmul.f32 %v816, 0.3275911
        %v825 = vmul.f32 %v817, 0.3275911
        %v826 = vmul.f32 %v818, 0.3275911
        %v827 = vadd.f32 %v819, 1.0
        %v828 = vadd.f32 %v820, 1.0
        %v829 = vadd.f32 %v821, 1.0
        %v830 = vadd.f32 %v822, 1.0
        %v831 = vadd.f32 %v823, 1.0
        %v832 = vadd.f32 %v824, 1.0
        %v833 = vadd.f32 %v825, 1.0
        %v834 = vadd.f32 %v826, 1.0
        %v835 = vrcp.pop %v827
        %v836 = vmul.f32 1.0, %v835
        %v837 = vrcp.pop %v828
        %v838 = vmul.f32 1.0, %v837
        %v839 = vrcp.pop %v829
        %v840 = vmul.f32 1.0, %v839
        %v841 = vrcp.pop %v830
        %v842 = vmul.f32 1.0, %v841
        %v843 = vrcp.pop %v831
        %v844 = vmul.f32 1.0, %v843
        %v845 = vrcp.pop %v832
        %v846 = vmul.f32 1.0, %v845
        %v847 = vrcp.pop %v833
        %v848 = vmul.f32 1.0, %v847
        %v849 = vrcp.pop %v834
        %v850 = vmul.f32 1.0, %v849
        %v851 = vmul.f32 %v836, 1.0614054
        %v852 = vmul.f32 %v838, 1.0614054
        %v853 = vmul.f32 %v840, 1.0614054
        %v854 = vmul.f32 %v842, 1.0614054
        %v855 = vmul.f32 %v844, 1.0614054
        %v856 = vmul.f32 %v846, 1.0614054
        %v857 = vmul.f32 %v848, 1.0614054
        %v858 = vmul.f32 %v850, 1.0614054
        %v859 = vadd.f32 %v851, -1.4531521
        %v860 = vadd.f32 %v852, -1.4531521
        %v861 = vadd.f32 %v853, -1.4531521
        %v862 = vadd.f32 %v854, -1.4531521
        %v863 = vadd.f32 %v855, -1.4531521
        %v864 = vadd.f32 %v856, -1.4531521
        %v865 = vadd.f32 %v857, -1.4531521
        %v866 = vadd.f32 %v858, -1.4531521
        %v867 = vmul.f32 %v859, %v836
        %v868 = vmul.f32 %v860, %v838
        %v869 = vmul.f32 %v861, %v840
        %v870 = vmul.f32 %v862, %v842
        %v871 = vmul.f32 %v863, %v844
        %v872 = vmul.f32 %v864, %v846
        %v873 = vmul.f32 %v865, %v848
        %v874 = vmul.f32 %v866, %v850
        %v875 = vadd.f32 %v867, 1.4214138
        %v876 = vadd.f32 %v868, 1.4214138
        %v877 = vadd.f32 %v869, 1.4214138
        %v878 = vadd.f32 %v870, 1.4214138
        %v879 = vadd.f32 %v871, 1.4214138
        %v880 = vadd.f32 %v872, 1.4214138
        %v881 = vadd.f32 %v873, 1.4214138
        %v882 = vadd.f32 %v874, 1.4214138
        %v883 = vmul.f32 %v875, %v836
        %v884 = vmul.f32 %v876, %v838
        %v885 = vmul.f32 %v877, %v840
        %v886 = vmul.f32 %v878, %v842
        %v887 = vmul.f32 %v879, %v844
        %v888 = vmul.f32 %v880, %v846
        %v889 = vmul.f32 %v881, %v848
        %v890 = vmul.f32 %v882, %v850
        %v891 = vadd.f32 %v883, -0.28449672
        %v892 = vadd.f32 %v884, -0.28449672
        %v893 = vadd.f32 %v885, -0.28449672
        %v894 = vadd.f32 %v886, -0.28449672
        %v895 = vadd.f32 %v887, -0.28449672
        %v896 = vadd.f32 %v888, -0.28449672
        %v897 = vadd.f32 %v889, -0.28449672
        %v898 = vadd.f32 %v890, -0.28449672
        %v899 = vmul.f32 %v891, %v836
        %v900 = vmul.f32 %v892, %v838
        %v901 = vmul.f32 %v893, %v840
        %v902 = vmul.f32 %v894, %v842
        %v903 = vmul.f32 %v895, %v844
        %v904 = vmul.f32 %v896, %v846
        %v905 = vmul.f32 %v897, %v848
        %v906 = vmul.f32 %v898, %v850
        %v907 = vadd.f32 %v899, 0.2548296
        %v908 = vadd.f32 %v900, 0.2548296
        %v909 = vadd.f32 %v901, 0.2548296
        %v910 = vadd.f32 %v902, 0.2548296
        %v911 = vadd.f32 %v903, 0.2548296
        %v912 = vadd.f32 %v904, 0.2548296
        %v913 = vadd.f32 %v905, 0.2548296
        %v914 = vadd.f32 %v906, 0.2548296
        %v915 = vmul.f32 %v907, %v836
        %v916 = vmul.f32 %v908, %v838
        %v917 = vmul.f32 %v909, %v840
        %v918 = vmul.f32 %v910, %v842
        %v919 = vmul.f32 %v911, %v844
        %v920 = vmul.f32 %v912, %v846
        %v921 = vmul.f32 %v913, %v848
        %v922 = vmul.f32 %v914, %v850
        %v923 = vsub.f32 0.0, %v811
        %v924 = vsub.f32 0.0, %v812
        %v925 = vsub.f32 0.0, %v813
        %v926 = vsub.f32 0.0, %v814
        %v927 = vsub.f32 0.0, %v815
        %v928 = vsub.f32 0.0, %v816
        %v929 = vsub.f32 0.0, %v817
        %v930 = vsub.f32 0.0, %v818
        %v931 = vmul.f32 %v923, %v811
        %v932 = vmul.f32 %v924, %v812
        %v933 = vmul.f32 %v925, %v813
        %v934 = vmul.f32 %v926, %v814
        %v935 = vmul.f32 %v927, %v815
        %v936 = vmul.f32 %v928, %v816
        %v937 = vmul.f32 %v929, %v817
        %v938 = vmul.f32 %v930, %v818
        %v939 = vmul.f32 %v931, 1.442695
        %v940 = vpow.pop %v939
        %v941 = vmul.f32 %v932, 1.442695
        %v942 = vpow.pop %v941
        %v943 = vmul.f32 %v933, 1.442695
        %v944 = vpow.pop %v943
        %v945 = vmul.f32 %v934, 1.442695
        %v946 = vpow.pop %v945
        %v947 = vmul.f32 %v935, 1.442695
        %v948 = vpow.pop %v947
        %v949 = vmul.f32 %v936, 1.442695
        %v950 = vpow.pop %v949
        %v951 = vmul.f32 %v937, 1.442695
        %v952 = vpow.pop %v951
        %v953 = vmul.f32 %v938, 1.442695
        %v954 = vpow.pop %v953
        %v955 = vmul.f32 %v915, %v940
        %v956 = vmul.f32 %v916, %v942
        %v957 = vmul.f32 %v917, %v944
        %v958 = vmul.f32 %v918, %v946
        %v959 = vmul.f32 %v919, %v948
        %v960 = vmul.f32 %v920, %v950
        %v961 = vmul.f32 %v921, %v952
        %v962 = vmul.f32 %v922, %v954
        %v963 = vsub.f32 1.0, %v955
        %v964 = vsub.f32 1.0, %v956
        %v965 = vsub.f32 1.0, %v957
        %v966 = vsub.f32 1.0, %v958
        %v967 = vsub.f32 1.0, %v959
        %v968 = vsub.f32 1.0, %v960
        %v969 = vsub.f32 1.0, %v961
        %v970 = vsub.f32 1.0, %v962
        %v971 = vmul.f32 %v803, %v963
        %v972 = vmul.f32 %v804, %v964
        %v973 = vmul.f32 %v805, %v965
        %v974 = vmul.f32 %v806, %v966
        %v975 = vmul.f32 %v807, %v967
        %v976 = vmul.f32 %v808, %v968
        %v977 = vmul.f32 %v809, %v969
        %v978 = vmul.f32 %v810, %v970
        %v979 = vadd.f32 %v971, 1.0
        %v980 = vadd.f32 %v972, 1.0
        %v981 = vadd.f32 %v973, 1.0
        %v982 = vadd.f32 %v974, 1.0
        %v983 = vadd.f32 %v975, 1.0
        %v984 = vadd.f32 %v976, 1.0
        %v985 = vadd.f32 %v977, 1.0
        %v986 = vadd.f32 %v978, 1.0
        %v987 = vmul.f32 %v779, %v979
        %v988 = vmul.f32 %v780, %v980
        %v989 = vmul.f32 %v781, %v981
        %v990 = vmul.f32 %v782, %v982
        %v991 = vmul.f32 %v783, %v983
        %v992 = vmul.f32 %v784, %v984
        %v993 = vmul.f32 %v785, %v985
        %v994 = vmul.f32 %v786, %v986
        %v995 = vpack.c.bf16 %v991, %v987
        %v996 = vpack.c.bf16 %v992, %v988
        %v997 = vpack.c.bf16 %v993, %v989
        %v998 = vpack.c.bf16 %v994, %v990
        %v999 = vld [vmem:[#allocation7] sm:$0xff]
        %v1000 = vld [vmem:[#allocation7 + $0x8] sm:$0xff]
        %v1001 = vld [vmem:[#allocation7 + $0x10] sm:$0xff]
        %v1002 = vld [vmem:[#allocation7 + $0x18] sm:$0xff]
        %v1003 = vld [vmem:[#allocation7 + $0x20] sm:$0xff]
        %v1004 = vld [vmem:[#allocation7 + $0x28] sm:$0xff]
        %v1005 = vld [vmem:[#allocation7 + $0x30] sm:$0xff]
        %v1006 = vld [vmem:[#allocation7 + $0x38] sm:$0xff]
        %v1007 = vld [vmem:[#allocation7 + $0x40] sm:$0xff]
        %v1008 = vld [vmem:[#allocation7 + $0x48] sm:$0xff]
        %v1009 = vld [vmem:[#allocation7 + $0x50] sm:$0xff]
        %v1010 = vld [vmem:[#allocation7 + $0x58] sm:$0xff]
        %v1011 = vld [vmem:[#allocation7 + $0x60] sm:$0xff]
        %v1012 = vld [vmem:[#allocation7 + $0x68] sm:$0xff]
        %v1013 = vld [vmem:[#allocation7 + $0x70] sm:$0xff]
        %v1014 = vld [vmem:[#allocation7 + $0x78] sm:$0xff]
        %v1015 = vld [vmem:[#allocation7 + $0x80] sm:$0xff]
        %v1016 = vld [vmem:[#allocation7 + $0x88] sm:$0xff]
        %v1017 = vld [vmem:[#allocation7 + $0x90] sm:$0xff]
        %v1018 = vld [vmem:[#allocation7 + $0x98] sm:$0xff]
        %v1019 = vld [vmem:[#allocation7 + $0xa0] sm:$0xff]
        %v1020 = vld [vmem:[#allocation7 + $0xa8] sm:$0xff]
        %v1021 = vld [vmem:[#allocation7 + $0xb0] sm:$0xff]
        %v1022 = vld [vmem:[#allocation7 + $0xb8] sm:$0xff]
        %v1023 = vld [vmem:[#allocation7 + $0xc0] sm:$0xff]
        %v1024 = vld [vmem:[#allocation7 + $0xc8] sm:$0xff]
        %v1025 = vld [vmem:[#allocation7 + $0xd0] sm:$0xff]
        %v1026 = vld [vmem:[#allocation7 + $0xd8] sm:$0xff]
        %v1027 = vld [vmem:[#allocation7 + $0xe0] sm:$0xff]
        %v1028 = vld [vmem:[#allocation7 + $0xe8] sm:$0xff]
        %v1029 = vld [vmem:[#allocation7 + $0xf0] sm:$0xff]
        %v1030 = vld [vmem:[#allocation7 + $0xf8] sm:$0xff]
        %v1031 = vld [vmem:[#allocation7 + $0x100] sm:$0xff]
        %v1032 = vld [vmem:[#allocation7 + $0x108] sm:$0xff]
        %v1033 = vld [vmem:[#allocation7 + $0x110] sm:$0xff]
        %v1034 = vld [vmem:[#allocation7 + $0x118] sm:$0xff]
        %v1035 = vld [vmem:[#allocation7 + $0x120] sm:$0xff]
        %v1036 = vld [vmem:[#allocation7 + $0x128] sm:$0xff]
        %v1037 = vld [vmem:[#allocation7 + $0x130] sm:$0xff]
        %v1038 = vld [vmem:[#allocation7 + $0x138] sm:$0xff]
        %v1039 = vld [vmem:[#allocation7 + $0x140] sm:$0xff]
        %v1040 = vld [vmem:[#allocation7 + $0x148] sm:$0xff]
        %v1041 = vld [vmem:[#allocation7 + $0x150] sm:$0xff]
        %v1042 = vld [vmem:[#allocation7 + $0x158] sm:$0xff]
        %v1043 = vld [vmem:[#allocation7 + $0x160] sm:$0xff]
        %v1044 = vld [vmem:[#allocation7 + $0x168] sm:$0xff]
        %v1045 = vld [vmem:[#allocation7 + $0x170] sm:$0xff]
        %v1046 = vld [vmem:[#allocation7 + $0x178] sm:$0xff]
        %v1047 = vld [vmem:[#allocation7 + $0x180] sm:$0xff]
        %v1048 = vld [vmem:[#allocation7 + $0x188] sm:$0xff]
        %v1049 = vld [vmem:[#allocation7 + $0x190] sm:$0xff]
        %v1050 = vld [vmem:[#allocation7 + $0x198] sm:$0xff]
        %v1051 = vld [vmem:[#allocation7 + $0x1a0] sm:$0xff]
        %v1052 = vld [vmem:[#allocation7 + $0x1a8] sm:$0xff]
        %v1053 = vld [vmem:[#allocation7 + $0x1b0] sm:$0xff]
        %v1054 = vld [vmem:[#allocation7 + $0x1b8] sm:$0xff]
        %v1055 = vld [vmem:[#allocation7 + $0x1c0] sm:$0xff]
        %v1056 = vld [vmem:[#allocation7 + $0x1c8] sm:$0xff]
        %v1057 = vld [vmem:[#allocation7 + $0x1d0] sm:$0xff]
        %v1058 = vld [vmem:[#allocation7 + $0x1d8] sm:$0xff]
        %v1059 = vld [vmem:[#allocation7 + $0x1e0] sm:$0xff]
        %v1060 = vld [vmem:[#allocation7 + $0x1e8] sm:$0xff]
        %v1061 = vld [vmem:[#allocation7 + $0x1f0] sm:$0xff]
        %v1062 = vld [vmem:[#allocation7 + $0x1f8] sm:$0xff]
        %v1063 = vld [vmem:[%s4] sm:$0x3]
        %v1065 = vlaneseq
        %v1066 = vshrl.u32 %v1065, 7
        %v1067 = vsub.s32 0, %v1066
        %v1068 = vrot.slane %v1063, %v1067
        %v1069 = vlaneseq
        %v1070 = vshrl.u32 %v1069, 7
        %v1071 = vsub.s32 1, %v1070
        %v1072 = vrot.slane %v1063, %v1071
        %v1139 = vunpack.c.l.b16 %v999
        %v1140 = vunpack.c.h.b16 %v999
        %v1141 = vunpack.c.l.b16 %v1000
        %v1142 = vunpack.c.h.b16 %v1000
        %v1143 = vunpack.c.l.b16 %v1001
        %v1144 = vunpack.c.h.b16 %v1001
        %v1145 = vunpack.c.l.b16 %v1002
        %v1146 = vunpack.c.h.b16 %v1002
        %v1147 = vunpack.c.l.b16 %v1003
        %v1148 = vunpack.c.h.b16 %v1003
        %v1149 = vunpack.c.l.b16 %v1004
        %v1150 = vunpack.c.h.b16 %v1004
        %v1151 = vunpack.c.l.b16 %v1005
        %v1152 = vunpack.c.h.b16 %v1005
        %v1153 = vunpack.c.l.b16 %v1006
        %v1154 = vunpack.c.h.b16 %v1006
        %v1155 = vunpack.c.l.b16 %v1007
        %v1156 = vunpack.c.h.b16 %v1007
        %v1157 = vunpack.c.l.b16 %v1008
        %v1158 = vunpack.c.h.b16 %v1008
        %v1159 = vunpack.c.l.b16 %v1009
        %v1160 = vunpack.c.h.b16 %v1009
        %v1161 = vunpack.c.l.b16 %v1010
        %v1162 = vunpack.c.h.b16 %v1010
        %v1163 = vunpack.c.l.b16 %v1011
        %v1164 = vunpack.c.h.b16 %v1011
        %v1165 = vunpack.c.l.b16 %v1012
        %v1166 = vunpack.c.h.b16 %v1012
        %v1167 = vunpack.c.l.b16 %v1013
        %v1168 = vunpack.c.h.b16 %v1013
        %v1169 = vunpack.c.l.b16 %v1014
        %v1170 = vunpack.c.h.b16 %v1014
        %v1171 = vunpack.c.l.b16 %v1015
        %v1172 = vunpack.c.h.b16 %v1015
        %v1173 = vunpack.c.l.b16 %v1016
        %v1174 = vunpack.c.h.b16 %v1016
        %v1175 = vunpack.c.l.b16 %v1017
        %v1176 = vunpack.c.h.b16 %v1017
        %v1177 = vunpack.c.l.b16 %v1018
        %v1178 = vunpack.c.h.b16 %v1018
        %v1179 = vunpack.c.l.b16 %v1019
        %v1180 = vunpack.c.h.b16 %v1019
        %v1181 = vunpack.c.l.b16 %v1020
        %v1182 = vunpack.c.h.b16 %v1020
        %v1183 = vunpack.c.l.b16 %v1021
        %v1184 = vunpack.c.h.b16 %v1021
        %v1185 = vunpack.c.l.b16 %v1022
        %v1186 = vunpack.c.h.b16 %v1022
        %v1187 = vunpack.c.l.b16 %v1023
        %v1188 = vunpack.c.h.b16 %v1023
        %v1189 = vunpack.c.l.b16 %v1024
        %v1190 = vunpack.c.h.b16 %v1024
        %v1191 = vunpack.c.l.b16 %v1025
        %v1192 = vunpack.c.h.b16 %v1025
        %v1193 = vunpack.c.l.b16 %v1026
        %v1194 = vunpack.c.h.b16 %v1026
        %v1195 = vunpack.c.l.b16 %v1027
        %v1196 = vunpack.c.h.b16 %v1027
        %v1197 = vunpack.c.l.b16 %v1028
        %v1198 = vunpack.c.h.b16 %v1028
        %v1199 = vunpack.c.l.b16 %v1029
        %v1200 = vunpack.c.h.b16 %v1029
        %v1201 = vunpack.c.l.b16 %v1030
        %v1202 = vunpack.c.h.b16 %v1030
        %v1203 = vunpack.c.l.b16 %v1031
        %v1204 = vunpack.c.h.b16 %v1031
        %v1205 = vunpack.c.l.b16 %v1032
        %v1206 = vunpack.c.h.b16 %v1032
        %v1207 = vunpack.c.l.b16 %v1033
        %v1208 = vunpack.c.h.b16 %v1033
        %v1209 = vunpack.c.l.b16 %v1034
        %v1210 = vunpack.c.h.b16 %v1034
        %v1211 = vunpack.c.l.b16 %v1035
        %v1212 = vunpack.c.h.b16 %v1035
        %v1213 = vunpack.c.l.b16 %v1036
        %v1214 = vunpack.c.h.b16 %v1036
        %v1215 = vunpack.c.l.b16 %v1037
        %v1216 = vunpack.c.h.b16 %v1037
        %v1217 = vunpack.c.l.b16 %v1038
        %v1218 = vunpack.c.h.b16 %v1038
        %v1219 = vunpack.c.l.b16 %v1039
        %v1220 = vunpack.c.h.b16 %v1039
        %v1221 = vunpack.c.l.b16 %v1040
        %v1222 = vunpack.c.h.b16 %v1040
        %v1223 = vunpack.c.l.b16 %v1041
        %v1224 = vunpack.c.h.b16 %v1041
        %v1225 = vunpack.c.l.b16 %v1042
        %v1226 = vunpack.c.h.b16 %v1042
        %v1227 = vunpack.c.l.b16 %v1043
        %v1228 = vunpack.c.h.b16 %v1043
        %v1229 = vunpack.c.l.b16 %v1044
        %v1230 = vunpack.c.h.b16 %v1044
        %v1231 = vunpack.c.l.b16 %v1045
        %v1232 = vunpack.c.h.b16 %v1045
        %v1233 = vunpack.c.l.b16 %v1046
        %v1234 = vunpack.c.h.b16 %v1046
        %v1235 = vunpack.c.l.b16 %v1047
        %v1236 = vunpack.c.h.b16 %v1047
        %v1237 = vunpack.c.l.b16 %v1048
        %v1238 = vunpack.c.h.b16 %v1048
        %v1239 = vunpack.c.l.b16 %v1049
        %v1240 = vunpack.c.h.b16 %v1049
        %v1241 = vunpack.c.l.b16 %v1050
        %v1242 = vunpack.c.h.b16 %v1050
        %v1243 = vunpack.c.l.b16 %v1051
        %v1244 = vunpack.c.h.b16 %v1051
        %v1245 = vunpack.c.l.b16 %v1052
        %v1246 = vunpack.c.h.b16 %v1052
        %v1247 = vunpack.c.l.b16 %v1053
        %v1248 = vunpack.c.h.b16 %v1053
        %v1249 = vunpack.c.l.b16 %v1054
        %v1250 = vunpack.c.h.b16 %v1054
        %v1251 = vunpack.c.l.b16 %v1055
        %v1252 = vunpack.c.h.b16 %v1055
        %v1253 = vunpack.c.l.b16 %v1056
        %v1254 = vunpack.c.h.b16 %v1056
        %v1255 = vunpack.c.l.b16 %v1057
        %v1256 = vunpack.c.h.b16 %v1057
        %v1257 = vunpack.c.l.b16 %v1058
        %v1258 = vunpack.c.h.b16 %v1058
        %v1259 = vunpack.c.l.b16 %v1059
        %v1260 = vunpack.c.h.b16 %v1059
        %v1261 = vunpack.c.l.b16 %v1060
        %v1262 = vunpack.c.h.b16 %v1060
        %v1263 = vunpack.c.l.b16 %v1061
        %v1264 = vunpack.c.h.b16 %v1061
        %v1265 = vunpack.c.l.b16 %v1062
        %v1266 = vunpack.c.h.b16 %v1062
        %v1267 = vpack.c.b16 %v1141, %v1139
        %v1268 = vpack.c.b16 %v1142, %v1140
        %v1269 = vpack.c.b16 %v1145, %v1143
        %v1270 = vpack.c.b16 %v1146, %v1144
        %v1271 = vpack.c.b16 %v1149, %v1147
        %v1272 = vpack.c.b16 %v1150, %v1148
        %v1273 = vpack.c.b16 %v1153, %v1151
        %v1274 = vpack.c.b16 %v1154, %v1152
        %v1275 = vpack.c.b16 %v1157, %v1155
        %v1276 = vpack.c.b16 %v1158, %v1156
        %v1277 = vpack.c.b16 %v1161, %v1159
        %v1278 = vpack.c.b16 %v1162, %v1160
        %v1279 = vpack.c.b16 %v1165, %v1163
        %v1280 = vpack.c.b16 %v1166, %v1164
        %v1281 = vpack.c.b16 %v1169, %v1167
        %v1282 = vpack.c.b16 %v1170, %v1168
        %v1283 = vpack.c.b16 %v1173, %v1171
        %v1284 = vpack.c.b16 %v1174, %v1172
        %v1285 = vpack.c.b16 %v1177, %v1175
        %v1286 = vpack.c.b16 %v1178, %v1176
        %v1287 = vpack.c.b16 %v1181, %v1179
        %v1288 = vpack.c.b16 %v1182, %v1180
        %v1289 = vpack.c.b16 %v1185, %v1183
        %v1290 = vpack.c.b16 %v1186, %v1184
        %v1291 = vpack.c.b16 %v1189, %v1187
        %v1292 = vpack.c.b16 %v1190, %v1188
        %v1293 = vpack.c.b16 %v1193, %v1191
        %v1294 = vpack.c.b16 %v1194, %v1192
        %v1295 = vpack.c.b16 %v1197, %v1195
        %v1296 = vpack.c.b16 %v1198, %v1196
        %v1297 = vpack.c.b16 %v1201, %v1199
        %v1298 = vpack.c.b16 %v1202, %v1200
        %v1299 = vpack.c.b16 %v1205, %v1203
        %v1300 = vpack.c.b16 %v1206, %v1204
        %v1301 = vpack.c.b16 %v1209, %v1207
        %v1302 = vpack.c.b16 %v1210, %v1208
        %v1303 = vpack.c.b16 %v1213, %v1211
        %v1304 = vpack.c.b16 %v1214, %v1212
        %v1305 = vpack.c.b16 %v1217, %v1215
        %v1306 = vpack.c.b16 %v1218, %v1216
        %v1307 = vpack.c.b16 %v1221, %v1219
        %v1308 = vpack.c.b16 %v1222, %v1220
        %v1309 = vpack.c.b16 %v1225, %v1223
        %v1310 = vpack.c.b16 %v1226, %v1224
        %v1311 = vpack.c.b16 %v1229, %v1227
        %v1312 = vpack.c.b16 %v1230, %v1228
        %v1313 = vpack.c.b16 %v1233, %v1231
        %v1314 = vpack.c.b16 %v1234, %v1232
        %v1315 = vpack.c.b16 %v1237, %v1235
        %v1316 = vpack.c.b16 %v1238, %v1236
        %v1317 = vpack.c.b16 %v1241, %v1239
        %v1318 = vpack.c.b16 %v1242, %v1240
        %v1319 = vpack.c.b16 %v1245, %v1243
        %v1320 = vpack.c.b16 %v1246, %v1244
        %v1321 = vpack.c.b16 %v1249, %v1247
        %v1322 = vpack.c.b16 %v1250, %v1248
        %v1323 = vpack.c.b16 %v1253, %v1251
        %v1324 = vpack.c.b16 %v1254, %v1252
        %v1325 = vpack.c.b16 %v1257, %v1255
        %v1326 = vpack.c.b16 %v1258, %v1256
        %v1327 = vpack.c.b16 %v1261, %v1259
        %v1328 = vpack.c.b16 %v1262, %v1260
        %v1329 = vpack.c.b16 %v1265, %v1263
        %v1330 = vpack.c.b16 %v1266, %v1264
        %1395 = vmatprep.subr.bf16.mxu0 %v1268
        %1396 = vmatpush1.bf16.msra.mxu0 %v1267
        %1397 = vmatprep.subr.bf16.mxu0 %v1270
        %1398 = vmatpush1.bf16.msra.mxu0 %v1269
        %1399 = vmatprep.subr.bf16.mxu0 %v1272
        %1400 = vmatpush1.bf16.msra.mxu0 %v1271
        %1401 = vmatprep.subr.bf16.mxu0 %v1274
        %1402 = vmatpush1.bf16.msra.mxu0 %v1273
        %1403 = vmatprep.subr.bf16.mxu0 %v1276
        %1404 = vmatpush1.bf16.msra.mxu0 %v1275
        %1405 = vmatprep.subr.bf16.mxu0 %v1278
        %1406 = vmatpush1.bf16.msra.mxu0 %v1277
        %1407 = vmatprep.subr.bf16.mxu0 %v1280
        %1408 = vmatpush1.bf16.msra.mxu0 %v1279
        %1409 = vmatprep.subr.bf16.mxu0 %v1282
        %1410 = vmatpush1.bf16.msra.mxu0 %v1281
        %1411 = vmatprep.subr.bf16.mxu0 %v1284
        %1412 = vmatpush1.bf16.msra.mxu0 %v1283
        %1413 = vmatprep.subr.bf16.mxu0 %v1286
        %1414 = vmatpush1.bf16.msra.mxu0 %v1285
        %1415 = vmatprep.subr.bf16.mxu0 %v1288
        %1416 = vmatpush1.bf16.msra.mxu0 %v1287
        %1417 = vmatprep.subr.bf16.mxu0 %v1290
        %1418 = vmatpush1.bf16.msra.mxu0 %v1289
        %1419 = vmatprep.subr.bf16.mxu0 %v1292
        %1420 = vmatpush1.bf16.msra.mxu0 %v1291
        %1421 = vmatprep.subr.bf16.mxu0 %v1294
        %1422 = vmatpush1.bf16.msra.mxu0 %v1293
        %1423 = vmatprep.subr.bf16.mxu0 %v1296
        %1424 = vmatpush1.bf16.msra.mxu0 %v1295
        %1425 = vmatprep.subr.bf16.mxu0 %v1298
        %1426 = vmatpush1.bf16.msra.mxu0 %v1297
        %1427 = vmatprep.mubr.bf16.mxu0 %v996
        %1428 = vmatmul.mubr.bf16.gmra.mrb[0].mxu0 %v995
        %v1429 = vpop.f32.mrb[0].mxu0
        %v1430 = vadd.f32 %v1068, %v1429
        %v1431 = vpop.f32.mrb[0].mxu0
        %v1432 = vadd.f32 %v1072, %v1431
        %v1433 = vpop.f32.mrb[0].mxu0
        %v1434 = vadd.f32 %v1068, %v1433
        %v1435 = vpop.f32.mrb[0].mxu0
        %v1436 = vadd.f32 %v1072, %v1435
        %1437 = vdwg.mxu0
        %1438 = vmatprep.subr.bf16.mxu0 %v1300
        %1439 = vmatpush1.bf16.msra.mxu0 %v1299
        %1440 = vmatprep.subr.bf16.mxu0 %v1302
        %1441 = vmatpush1.bf16.msra.mxu0 %v1301
        %1442 = vmatprep.subr.bf16.mxu0 %v1304
        %1443 = vmatpush1.bf16.msra.mxu0 %v1303
        %1444 = vmatprep.subr.bf16.mxu0 %v1306
        %1445 = vmatpush1.bf16.msra.mxu0 %v1305
        %1446 = vmatprep.subr.bf16.mxu0 %v1308
        %1447 = vmatpush1.bf16.msra.mxu0 %v1307
        %1448 = vmatprep.subr.bf16.mxu0 %v1310
        %1449 = vmatpush1.bf16.msra.mxu0 %v1309
        %1450 = vmatprep.subr.bf16.mxu0 %v1312
        %1451 = vmatpush1.bf16.msra.mxu0 %v1311
        %1452 = vmatprep.subr.bf16.mxu0 %v1314
        %1453 = vmatpush1.bf16.msra.mxu0 %v1313
        %1454 = vmatprep.subr.bf16.mxu0 %v1316
        %1455 = vmatpush1.bf16.msra.mxu0 %v1315
        %1456 = vmatprep.subr.bf16.mxu0 %v1318
        %1457 = vmatpush1.bf16.msra.mxu0 %v1317
        %1458 = vmatprep.subr.bf16.mxu0 %v1320
        %1459 = vmatpush1.bf16.msra.mxu0 %v1319
        %1460 = vmatprep.subr.bf16.mxu0 %v1322
        %1461 = vmatpush1.bf16.msra.mxu0 %v1321
        %1462 = vmatprep.subr.bf16.mxu0 %v1324
        %1463 = vmatpush1.bf16.msra.mxu0 %v1323
        %1464 = vmatprep.subr.bf16.mxu0 %v1326
        %1465 = vmatpush1.bf16.msra.mxu0 %v1325
        %1466 = vmatprep.subr.bf16.mxu0 %v1328
        %1467 = vmatpush1.bf16.msra.mxu0 %v1327
        %1468 = vmatprep.subr.bf16.mxu0 %v1330
        %1469 = vmatpush1.bf16.msra.mxu0 %v1329
        %1470 = vmatprep.mubr.bf16.mxu0 %v998
        %1471 = vmatmul.mubr.bf16.gmra.mrb[0].mxu0 %v997
        %v1472 = vpop.f32.mrb[0].mxu0
        %v1473 = vadd.f32 %v1430, %v1472
        %v1474 = vpop.f32.mrb[0].mxu0
        %v1475 = vadd.f32 %v1432, %v1474
        %v1476 = vpop.f32.mrb[0].mxu0
        %v1477 = vadd.f32 %v1434, %v1476
        %v1478 = vpop.f32.mrb[0].mxu0
        %v1479 = vadd.f32 %v1436, %v1478
        %1480 = vdwg.mxu0
        %1481 = vst [vmem:[%s272] sm:$0xff] %v1473
        %1482 = vst [vmem:[%s272 + $0x8] sm:$0xff] %v1475
        %1483 = vst [vmem:[%s272 + $0x10] sm:$0xff] %v1477
        %1484 = vst [vmem:[%s272 + $0x18] sm:$0xff] %v1479
        %s1485 = sand.u32 %s141, 1
        %s1486 = scalar_lea.sflag [#allocation4], %s1485
        %s1487 = sand.u32 %s141, 1
        %s1488 = smul.addr %s1487, 32
        %s1489 = scalar_lea.vmem [#allocation8], %s1488
        // Predicated region
        $region53: #{tpu_custom_call.1} parent=39 // pred_check
          %p1490 = pneg %p151
        $region54: #{tpu_custom_call.1} parent=39 // pred_check_branch
          %1492 = sbr.rel (%p1490) target = $region56
        $region55: #{tpu_custom_call.1} parent=39 // pred_region
          %s1493 = smul.u32 2, %s23
          %s1495 = ssub.s32 512, 512
          %1496 = vsyncadd %s1486, %s1495
          %s1497 = smul.addr %s1493, 2
          %s1498 = smul.addr %s1497, 128
          %s1499 = scalar_lea.hbm %s5, %s1498
          %s1500 = sshll.u32 %s1489, 4
          %s1501 = int_to_ptr.vmem [resolvable:$true] %s1500
          %1506 = dma.vmem_to_hbm [thread:$0]  %s1501, 512, %s1499, %s1486, 256, 256, 16
        $region56: #{tpu_custom_call.1} parent=39 // pred_fallthru
          _
      $region40: #{tpu_custom_call.1} parent=5 // pred_fallthru
        _
      %p1507 = scmp.le.s32.totalorder 2, %s18
      // Predicated region
      $region57: #{tpu_custom_call.1} parent=5 // pred_check
        %p1508 = pneg %p1507
      $region58: #{tpu_custom_call.1} parent=5 // pred_check_branch
        %1510 = sbr.rel (%p1508) target = $region60
      $region59: #{tpu_custom_call.1} parent=5 // pred_region
        %s1511 = ssub.s32 %s18, 2
        // Predicated region
        $region61: #{tpu_custom_call.1} parent=59 // pred_check
          %p1512 = pneg %p157
        $region62: #{tpu_custom_call.1} parent=59 // pred_check_branch
          %1514 = sbr.rel (%p1512) target = $region64
        $region63: #{tpu_custom_call.1} parent=59 // pred_region
          %s1515 = sand.u32 %s142, 1
          %s1516 = scalar_lea.sflag [#allocation4], %s1515
          %s1517 = sand.u32 %s142, 1
          %s1518 = smul.addr %s1517, 32
          %s1519 = scalar_lea.vmem [#allocation8], %s1518
          %1520 = dma.done %s1516, 512
        $region64: #{tpu_custom_call.1} parent=59 // pred_fallthru
          _
      $region60: #{tpu_custom_call.1} parent=5 // pred_fallthru
        _
    $region6: #{tpu_custom_call.1} parent=1 // loop_footer
      %s22 = sadd.s32 1, %s18
    $region7: #{tpu_custom_call.1} parent=1 // loop_footer_branch
      %17 = sbr.rel target = $region3
    $region8: #{tpu_custom_call.1} parent=1 // loop_exit
      _
    %1521 = vsyncpa [#allocation3], 1
    %s1522 = scalar_lea.sflag [#allocation3], 1
    %1523 = vsyncpa %s1522, 1
    %1524 = vsyncpa [#allocation6], 1
    %1525 = vsyncpa [#allocation4], 1
    %s1526 = scalar_lea.sflag [#allocation4], 1
    %1527 = vsyncpa %s1526, 1

</llo_original>
